<compile_context>
chip_gen: v7x
topology: tpu7x:2x2x1
jax: 0.10.0
libtpu: 0.0.40
codegen_flags: <defaults>
</compile_context>

<pallas_src>
import jax
import jax.numpy as jnp
from jax import lax
from jax.experimental import pallas as pl
from jax.experimental.pallas import tpu as pltpu


def _make_mmd_kernel(cs, cd, cv, inv_hw, inv_c):
    """cs/cd/cv are the (padded) per-segment channel counts seen by the kernel."""

    def kernel(xs_ref, xd_ref, xv_ref, w1_ref, w2_ref, wc_ref, o_ref):
        bt, _, hw = xs_ref.shape
        w1 = w1_ref[...]                     # (Cr, C)  f32
        w2 = w2_ref[...]                     # (C, Cr)  f32
        wc = wc_ref[0, 0]                    # scalar f32: center tap of the kxk conv

        ones_hw = jnp.ones((hw, 1), jnp.float32)

        # --- Global average pool on the MXU: ONE matmul per segment (batched over Bt).
        # Merging (Bt, Cseg) into the sublane dim is layout-free (Cseg % 8 == 0).
        p_s = jnp.dot(xs_ref[...].astype(jnp.float32).reshape(bt * cs, hw),
                      ones_hw, preferred_element_type=jnp.float32)   # (Bt*Cs, 1)
        p_d = jnp.dot(xd_ref[...].astype(jnp.float32).reshape(bt * cd, hw),
                      ones_hw, preferred_element_type=jnp.float32)   # (Bt*Cd, 1)
        p_v = jnp.dot(xv_ref[...].astype(jnp.float32).reshape(bt * cv, hw),
                      ones_hw, preferred_element_type=jnp.float32)   # (Bt*Cv, 1)

        # Assemble pooled as (C, Bt) from 8-aligned static sublane slices (tiny data).
        cols = [jnp.concatenate([p_s[b * cs:(b + 1) * cs],
                                 p_d[b * cd:(b + 1) * cd],
                                 p_v[b * cv:(b + 1) * cv]], axis=0)
                for b in range(bt)]
        pooled_t = jnp.concatenate(cols, axis=1) * inv_hw            # (C, Bt)

        # --- ChannelAttention MLP, batched over Bt on the MXU.
        h = jnp.maximum(
            jnp.dot(w1, pooled_t, preferred_element_type=jnp.float32), 0.0)   # (Cr, Bt)
        att_t = jax.nn.sigmoid(
            jnp.dot(w2, h, preferred_element_type=jnp.float32))               # (C, Bt)

        # --- SpatialAttention on the 1x1 pooled map: only the center tap matters.
        # avg_pool(x*att) over HW then mean over C == mean_c(pooled_c * att_c).
        g = jnp.sum(pooled_t * att_t, axis=0, keepdims=True) * inv_c          # (1, Bt)
        spat = jax.nn.sigmoid(g * wc)                                         # (1, Bt)

        # Fold the scalar spatial gate into the channel gate.
        att3 = (att_t * spat).T[:, :, None]                                   # (Bt, C, 1)

        # Re-read the refs here (keeps the f32 tile live ranges short) and write the
        # three segments at static, sublane-aligned offsets with lane-dense stores.
        o_ref[:, 0:cs, :] = (
            xs_ref[...].astype(jnp.float32) * att3[:, 0:cs, :]).astype(o_ref.dtype)
        o_ref[:, cs:cs + cd, :] = (
            xd_ref[...].astype(jnp.float32) * att3[:, cs:cs + cd, :]).astype(o_ref.dtype)
        o_ref[:, cs + cd:, :] = (
            xv_ref[...].astype(jnp.float32) * att3[:, cs + cd:, :]).astype(o_ref.dtype)

    return kernel


def _round_up(x, m):
    return ((x + m - 1) // m) * m


def _pad_last(x, target):
    if x.shape[-1] == target:
        return x
    widths = [(0, 0)] * (x.ndim - 1) + [(0, target - x.shape[-1])]
    return jnp.pad(x, widths)


def _pad_axis(x, axis, target):
    if x.shape[axis] == target:
        return x
    widths = [(0, 0)] * x.ndim
    widths[axis] = (0, target - x.shape[axis])
    return jnp.pad(x, widths)


def _tpu_vmem_budget():
    """Return (tile_budget_bytes, vmem_limit_bytes, num_tensorcores) per generation."""
    physical = 128 * 1024 * 1024
    try:
        info = pltpu.get_tpu_info()
        physical = int(getattr(info, "vmem_capacity_bytes", physical))
    except Exception:
        pass
    n_tc = 1
    try:
        kind = jax.devices()[0].device_kind.lower()
    except Exception:
        kind = ""
    if "v7" in kind:
        n_tc = 2
        physical = min(physical, 64 * 1024 * 1024)   # 64 MiB VMEM per TensorCore
    budget = min((physical * 3) // 4, 64 * 1024 * 1024)   # ~64 MiB v5e/v6e, ~48 MiB v7x
    limit = int(min(physical, budget + (8 << 20)))
    return budget, limit, n_tc


def _choose_bt(B, per_batch_bytes, budget_bytes, n_tc):
    """Largest batch block that fits the VMEM budget; on multi-TC chips keep >= n_tc
    grid steps so the batch axis can be split across cores."""
    bt = max(1, min(B, budget_bytes // max(1, per_batch_bytes)))
    if n_tc > 1 and B >= n_tc:
        bt = min(bt, max(1, B // n_tc))
    while B % bt != 0:   # blocks must tile B exactly
        bt -= 1
    return max(1, bt)


def mmd_forward(f_s, f_d, f_v, fc1_w, fc2_w, conv_w):
    """Pallas forward.  Inputs are NCHW; output is NCHW [B, Cs+Cd+Cv, H, W]."""
    B, Cs, H, W = f_s.shape
    Cd = f_d.shape[1]
    Cv = f_v.shape[1]
    C = Cs + Cd + Cv
    HW = H * W
    Cr = fc1_w.shape[0]
    dtype = f_s.dtype                        # keep caller dtype through the DMA
    itemsize = jnp.dtype(dtype).itemsize

    k = conv_w.shape[-1]
    assert k % 2 == 1, "spatial_kernel_size must be odd"
    # Only the center tap of the kxk kernel touches the 1x1 pooled (zero padded) map.
    wc = jnp.reshape(conv_w[0, 0, k // 2, k // 2], (1, 1)).astype(jnp.float32)

    # Padded geometry: lane-dense HW (multiple of 128), 8-aligned channel segments.
    HW_p = _round_up(HW, 128)
    Cs_p, Cd_p, Cv_p = (_round_up(c, 8) for c in (Cs, Cd, Cv))
    C_p = Cs_p + Cd_p + Cv_p
    seg_padded = (Cs_p, Cd_p, Cv_p) != (Cs, Cd, Cv)
    padded = (HW_p != HW) or seg_padded

    # Free (bitcast) NCHW -> (B, Cseg, H*W) reshapes; padding copies only if needed.
    xs = _pad_axis(_pad_last(f_s.reshape(B, Cs, HW), HW_p), 1, Cs_p)
    xd = _pad_axis(_pad_last(f_d.reshape(B, Cd, HW), HW_p), 1, Cd_p)
    xv = _pad_axis(_pad_last(f_v.reshape(B, Cv, HW), HW_p), 1, Cv_p)

    # FC weights in their native PyTorch orientation; pad per-segment if needed.
    w1 = fc1_w.astype(jnp.float32)            # (Cr, C)
    w2 = fc2_w.astype(jnp.float32)            # (C, Cr)
    if seg_padded:
        segs = [(0, Cs, Cs_p), (Cs, Cd, Cd_p), (Cs + Cd, Cv, Cv_p)]
        w1 = jnp.concatenate(
            [_pad_last(w1[:, o:o + c], cp) for o, c, cp in segs], axis=1)     # (Cr, C_p)
        w2 = jnp.concatenate(
            [_pad_axis(w2[o:o + c, :], 0, cp) for o, c, cp in segs], axis=0)  # (C_p, Cr)

    # Batch blocking against the per-generation VMEM budget.
    budget, vmem_limit, n_tc = _tpu_vmem_budget()
    # Double-buffered in + out tiles plus one f32 temp per element, per batch.
    per_batch = C_p * HW_p * (4 * itemsize + 4)
    Bt = _choose_bt(B, per_batch, budget, n_tc)
    grid = (B // Bt,)

    kernel = _make_mmd_kernel(Cs_p, Cd_p, Cv_p, 1.0 / HW, 1.0 / C)

    cost = pl.CostEstimate(
        flops=int(B * (3 * C_p * HW_p + 4 * Cr * C_p + 4 * C_p)),
        transcendentals=int(B * (C_p + 1)),
        bytes_accessed=int(2 * B * C_p * HW_p * itemsize + 8 * Cr * C_p + 4),
    )

    def run(dim_semantics):
        return pl.pallas_call(
            kernel,
            out_shape=jax.ShapeDtypeStruct((B, C_p, HW_p), dtype),
            grid_spec=pltpu.PrefetchScalarGridSpec(
                num_scalar_prefetch=0,
                grid=grid,
                in_specs=[
                    pl.BlockSpec((Bt, Cs_p, HW_p), lambda i: (i, 0, 0)),
                    pl.BlockSpec((Bt, Cd_p, HW_p), lambda i: (i, 0, 0)),
                    pl.BlockSpec((Bt, Cv_p, HW_p), lambda i: (i, 0, 0)),
                    pl.BlockSpec((Cr, C_p), lambda i: (0, 0)),
                    pl.BlockSpec((C_p, Cr), lambda i: (0, 0)),
                    pl.BlockSpec(memory_space=pltpu.MemorySpace.SMEM),
                ],
                out_specs=pl.BlockSpec((Bt, C_p, HW_p), lambda i: (i, 0, 0)),
            ),
            compiler_params=pltpu.CompilerParams(
                dimension_semantics=dim_semantics,
                vmem_limit_bytes=vmem_limit),
            cost_estimate=cost,
        )(xs, xd, xv, w1, w2, wc)

    if n_tc > 1 and grid[0] % n_tc == 0:
        core_parallel = getattr(pltpu, "CORE_PARALLEL", "parallel")
        try:
            out = run((core_parallel,))
        except Exception:
            out = run(("parallel",))      # fallback if core-parallel is rejected
    else:
        out = run(("parallel",))

    # Strip padding (no extra HBM traffic when nothing was padded).
    if padded:
        out_s = out[:, 0:Cs, :HW]
        out_d = out[:, Cs_p:Cs_p + Cd, :HW]
        out_v = out[:, Cs_p + Cd_p:Cs_p + Cd_p + Cv, :HW]
        out = jnp.concatenate([out_s, out_d, out_v], axis=1)
    return out.reshape(B, C, H, W)


def mmd_reference(f_s, f_d, f_v, fc1_w, fc2_w, conv_w):
    """Pure-JAX reference mirroring the PyTorch forward exactly (full 7x7 conv)."""
    x = jnp.concatenate([f_s, f_d, f_v], axis=1).astype(jnp.float32)
    B, C, H, W = x.shape
    # ChannelAttention
    pooled = x.mean(axis=(2, 3))                                      # (B, C)
    h = jnp.maximum(pooled @ fc1_w.T, 0.0)                            # (B, Cr)
    att = jax.nn.sigmoid(h @ fc2_w.T)                                 # (B, C)
    x_ca = x * att[:, :, None, None]
    # SpatialAttention (full 7x7 conv on the 1x1 pooled map, padding=3)
    y = x_ca.mean(axis=(2, 3)).mean(axis=1, keepdims=True)            # (B, 1)
    y = y.reshape(B, 1, 1, 1)
    pad = (conv_w.shape[-1] - 1) // 2
    y = lax.conv_general_dilated(
        y, conv_w.astype(jnp.float32),
        window_strides=(1, 1), padding=((pad, pad), (pad, pad)),
        dimension_numbers=("NCHW", "OIHW", "NCHW"))
    spat = jax.nn.sigmoid(y)                                          # (B,1,1,1)
    return x_ca * spat


if __name__ == "__main__":
    # cfgs (synthetic, in-script): in_channels_s=64, in_channels_d=32,
    # in_channels_v=32, reduction=16, spatial_kernel_size=7
    B, Cs, Cd, Cv, H, W = 2, 64, 32, 32, 16, 16
    C = Cs + Cd + Cv
    reduction = 16
    Cr = C // reduction
    ksize = 7

    key = jax.random.PRNGKey(0)
    k1, k2, k3, k4, k5, k6 = jax.random.split(key, 6)

    f_s = jax.random.normal(k1, (B, Cs, H, W), jnp.float32)
    f_d = jax.random.normal(k2, (B, Cd, H, W), jnp.float32)
    f_v = jax.random.normal(k3, (B, Cv, H, W), jnp.float32)

    # Deterministic parameter init (PyTorch weight shapes, no bias anywhere)
    fc1_w = 0.1 * jax.random.normal(k4, (Cr, C), jnp.float32)                 # Linear(C, C//r)
    fc2_w = 0.1 * jax.random.normal(k5, (C, Cr), jnp.float32)                 # Linear(C//r, C)
    conv_w = 0.1 * jax.random.normal(k6, (1, 1, ksize, ksize), jnp.float32)   # Conv2d(1,1,7)

    out = mmd_forward(f_s, f_d, f_v, fc1_w, fc2_w, conv_w)
    out = jax.block_until_ready(out)

    ref = jax.block_until_ready(mmd_reference(f_s, f_d, f_v, fc1_w, fc2_w, conv_w))

    assert out.shape == (B, C, H, W), out.shape
    assert jnp.allclose(out, ref, rtol=1e-5, atol=1e-5), float(jnp.max(jnp.abs(out - ref)))
    print("KERNEL_OK")
</pallas_src>

<mosaic_0001>
module attributes {stable_mosaic.version = 11 : i64} {
  func.func @kernel(%arg0: i32, %arg1: memref<2x64x256xf32, #tpu.memory_space<vmem>>, %arg2: memref<2x32x256xf32, #tpu.memory_space<vmem>>, %arg3: memref<2x32x256xf32, #tpu.memory_space<vmem>>, %arg4: memref<8x128xf32, #tpu.memory_space<vmem>>, %arg5: memref<128x8xf32, #tpu.memory_space<vmem>>, %arg6: memref<1x1xf32, #tpu.memory_space<smem>>, %arg7: memref<2x128x256xf32, #tpu.memory_space<vmem>>) attributes {dimension_semantics = [#tpu.dimension_semantics<parallel>], iteration_bounds = array<i64: 1>, scalar_prefetch = 0 : i64, scratch_operands = 0 : i64, tpu.core_type = #tpu.core_type<tc>, window_params = [{transform_indices = @transform_0, window_bounds = array<i64: 2, 64, 256>}, {transform_indices = @transform_1, window_bounds = array<i64: 2, 32, 256>}, {transform_indices = @transform_2, window_bounds = array<i64: 2, 32, 256>}, {pipeline_mode = #tpu.pipeline_mode<synchronous>, transform_indices = @transform_3, window_bounds = array<i64: 8, 128>}, {pipeline_mode = #tpu.pipeline_mode<synchronous>, transform_indices = @transform_4, window_bounds = array<i64: 128, 8>}, {transform_indices = @transform_5, window_bounds = array<i64: 1, 1>}, {transform_indices = @transform_6, window_bounds = array<i64: 2, 128, 256>}]} {
    %c0 = arith.constant 0 : index
    %c0_0 = arith.constant 0 : index
    %0 = vector.load %arg4[%c0, %c0_0] : memref<8x128xf32, #tpu.memory_space<vmem>>, vector<8x128xf32>
    %c0_1 = arith.constant 0 : index
    %c0_2 = arith.constant 0 : index
    %1 = vector.load %arg5[%c0_1, %c0_2] : memref<128x8xf32, #tpu.memory_space<vmem>>, vector<128x8xf32>
    %c0_3 = arith.constant 0 : index
    %c0_4 = arith.constant 0 : index
    %2 = memref.load %arg6[%c0_3, %c0_4] : memref<1x1xf32, #tpu.memory_space<smem>>
    %cst = arith.constant 1.000000e+00 : f32
    %3 = vector.broadcast %cst : f32 to vector<256x1xf32>
    %c0_5 = arith.constant 0 : index
    %c0_6 = arith.constant 0 : index
    %c0_7 = arith.constant 0 : index
    %4 = vector.load %arg1[%c0_5, %c0_6, %c0_7] : memref<2x64x256xf32, #tpu.memory_space<vmem>>, vector<2x64x256xf32>
    %5 = vector.shape_cast %4 : vector<2x64x256xf32> to vector<128x256xf32>
    %cst_8 = arith.constant dense<0.000000e+00> : vector<128x1xf32>
    %6 = tpu.matmul %5, %3, %cst_8 {dimension_numbers = #tpu.dot_dimension_numbers<[1], [0], [0], [1], [0, 0, 1, 1], [], []>} : vector<128x256xf32>, vector<256x1xf32>, vector<128x1xf32> -> vector<128x1xf32>
    %c0_9 = arith.constant 0 : index
    %c0_10 = arith.constant 0 : index
    %c0_11 = arith.constant 0 : index
    %7 = vector.load %arg2[%c0_9, %c0_10, %c0_11] : memref<2x32x256xf32, #tpu.memory_space<vmem>>, vector<2x32x256xf32>
    %8 = vector.shape_cast %7 : vector<2x32x256xf32> to vector<64x256xf32>
    %cst_12 = arith.constant dense<0.000000e+00> : vector<64x1xf32>
    %9 = tpu.matmul %8, %3, %cst_12 {dimension_numbers = #tpu.dot_dimension_numbers<[1], [0], [0], [1], [0, 0, 1, 1], [], []>} : vector<64x256xf32>, vector<256x1xf32>, vector<64x1xf32> -> vector<64x1xf32>
    %c0_13 = arith.constant 0 : index
    %c0_14 = arith.constant 0 : index
    %c0_15 = arith.constant 0 : index
    %10 = vector.load %arg3[%c0_13, %c0_14, %c0_15] : memref<2x32x256xf32, #tpu.memory_space<vmem>>, vector<2x32x256xf32>
    %11 = vector.shape_cast %10 : vector<2x32x256xf32> to vector<64x256xf32>
    %cst_16 = arith.constant dense<0.000000e+00> : vector<64x1xf32>
    %12 = tpu.matmul %11, %3, %cst_16 {dimension_numbers = #tpu.dot_dimension_numbers<[1], [0], [0], [1], [0, 0, 1, 1], [], []>} : vector<64x256xf32>, vector<256x1xf32>, vector<64x1xf32> -> vector<64x1xf32>
    %13 = vector.extract_strided_slice %6 {offsets = [0, 0], sizes = [64, 1], strides = [1, 1]} : vector<128x1xf32> to vector<64x1xf32>
    %14 = vector.extract_strided_slice %9 {offsets = [0, 0], sizes = [32, 1], strides = [1, 1]} : vector<64x1xf32> to vector<32x1xf32>
    %15 = vector.extract_strided_slice %12 {offsets = [0, 0], sizes = [32, 1], strides = [1, 1]} : vector<64x1xf32> to vector<32x1xf32>
    %16 = tpu.concatenate %13, %14, %15 in 0 : vector<64x1xf32>, vector<32x1xf32>, vector<32x1xf32> -> vector<128x1xf32>
    %17 = vector.extract_strided_slice %6 {offsets = [64, 0], sizes = [64, 1], strides = [1, 1]} : vector<128x1xf32> to vector<64x1xf32>
    %18 = vector.extract_strided_slice %9 {offsets = [32, 0], sizes = [32, 1], strides = [1, 1]} : vector<64x1xf32> to vector<32x1xf32>
    %19 = vector.extract_strided_slice %12 {offsets = [32, 0], sizes = [32, 1], strides = [1, 1]} : vector<64x1xf32> to vector<32x1xf32>
    %20 = tpu.concatenate %17, %18, %19 in 0 : vector<64x1xf32>, vector<32x1xf32>, vector<32x1xf32> -> vector<128x1xf32>
    %21 = tpu.concatenate %16, %20 in 1 : vector<128x1xf32>, vector<128x1xf32> -> vector<128x2xf32>
    %cst_17 = arith.constant 3.906250e-03 : f32
    %22 = vector.broadcast %cst_17 : f32 to vector<128x2xf32>
    %23 = arith.mulf %21, %22 : vector<128x2xf32>
    %cst_18 = arith.constant dense<0.000000e+00> : vector<8x2xf32>
    %24 = tpu.matmul %0, %23, %cst_18 {dimension_numbers = #tpu.dot_dimension_numbers<[1], [0], [0], [1], [0, 0, 1, 1], [], []>} : vector<8x128xf32>, vector<128x2xf32>, vector<8x2xf32> -> vector<8x2xf32>
    %cst_19 = arith.constant 0.000000e+00 : f32
    %25 = vector.broadcast %cst_19 : f32 to vector<8x2xf32>
    %26 = arith.maximumf %24, %25 : vector<8x2xf32>
    %cst_20 = arith.constant dense<0.000000e+00> : vector<128x2xf32>
    %27 = tpu.matmul %1, %26, %cst_20 {dimension_numbers = #tpu.dot_dimension_numbers<[1], [0], [0], [1], [0, 0, 1, 1], [], []>} : vector<128x8xf32>, vector<8x2xf32>, vector<128x2xf32> -> vector<128x2xf32>
    %28 = arith.negf %27 : vector<128x2xf32>
    %29 = math.exp %28 : vector<128x2xf32>
    %cst_21 = arith.constant 1.000000e+00 : f32
    %30 = vector.broadcast %cst_21 : f32 to vector<128x2xf32>
    %31 = arith.addf %30, %29 : vector<128x2xf32>
    %32 = arith.divf %30, %31 : vector<128x2xf32>
    %33 = arith.mulf %23, %32 : vector<128x2xf32>
    %cst_22 = arith.constant dense<0.000000e+00> : vector<2xf32>
    %34 = vector.multi_reduction <add>, %33, %cst_22 [0] : vector<128x2xf32> to vector<2xf32>
    %35 = vector.shape_cast %34 : vector<2xf32> to vector<1x2xf32>
    %cst_23 = arith.constant 7.812500e-03 : f32
    %36 = vector.broadcast %cst_23 : f32 to vector<1x2xf32>
    %37 = arith.mulf %35, %36 : vector<1x2xf32>
    %38 = vector.broadcast %2 : f32 to vector<1x2xf32>
    %39 = arith.mulf %37, %38 : vector<1x2xf32>
    %40 = arith.negf %39 : vector<1x2xf32>
    %41 = math.exp %40 : vector<1x2xf32>
    %cst_24 = arith.constant 1.000000e+00 : f32
    %42 = vector.broadcast %cst_24 : f32 to vector<1x2xf32>
    %43 = arith.addf %42, %41 : vector<1x2xf32>
    %44 = arith.divf %42, %43 : vector<1x2xf32>
    %45 = vector.broadcast %44 : vector<1x2xf32> to vector<128x2xf32>
    %46 = arith.mulf %32, %45 : vector<128x2xf32>
    %47 = tpu.transpose %46, [1, 0] : vector<128x2xf32> -> vector<2x128xf32>
    %48 = vector.shape_cast %47 : vector<2x128xf32> to vector<2x128x1xf32>
    %c0_25 = arith.constant 0 : index
    %c0_26 = arith.constant 0 : index
    %c0_27 = arith.constant 0 : index
    %49 = vector.load %arg1[%c0_25, %c0_26, %c0_27] : memref<2x64x256xf32, #tpu.memory_space<vmem>>, vector<2x64x256xf32>
    %50 = vector.extract_strided_slice %48 {offsets = [0, 0, 0], sizes = [2, 64, 1], strides = [1, 1, 1]} : vector<2x128x1xf32> to vector<2x64x1xf32>
    %51 = vector.broadcast %50 : vector<2x64x1xf32> to vector<2x64x256xf32>
    %52 = arith.mulf %49, %51 : vector<2x64x256xf32>
    %c0_28 = arith.constant 0 : index
    %c0_29 = arith.constant 0 : index
    %c0_30 = arith.constant 0 : index
    %53 = vector.load %arg7[%c0_28, %c0_29, %c0_30] : memref<2x128x256xf32, #tpu.memory_space<vmem>>, vector<2x64x256xf32>
    tpu.vector_store %arg7[%c0_28, %c0_29, %c0_30], %52 {strides = array<i32>} : memref<2x128x256xf32, #tpu.memory_space<vmem>>, vector<2x64x256xf32>,
    %c0_31 = arith.constant 0 : index
    %c0_32 = arith.constant 0 : index
    %c0_33 = arith.constant 0 : index
    %54 = vector.load %arg2[%c0_31, %c0_32, %c0_33] : memref<2x32x256xf32, #tpu.memory_space<vmem>>, vector<2x32x256xf32>
    %55 = vector.extract_strided_slice %48 {offsets = [0, 64, 0], sizes = [2, 32, 1], strides = [1, 1, 1]} : vector<2x128x1xf32> to vector<2x32x1xf32>
    %56 = vector.broadcast %55 : vector<2x32x1xf32> to vector<2x32x256xf32>
    %57 = arith.mulf %54, %56 : vector<2x32x256xf32>
    %c0_34 = arith.constant 0 : index
    %c64 = arith.constant 64 : index
    %c0_35 = arith.constant 0 : index
    %58 = vector.load %arg7[%c0_34, %c64, %c0_35] : memref<2x128x256xf32, #tpu.memory_space<vmem>>, vector<2x32x256xf32>
    tpu.vector_store %arg7[%c0_34, %c64, %c0_35], %57 {strides = array<i32>} : memref<2x128x256xf32, #tpu.memory_space<vmem>>, vector<2x32x256xf32>,
    %c0_36 = arith.constant 0 : index
    %c0_37 = arith.constant 0 : index
    %c0_38 = arith.constant 0 : index
    %59 = vector.load %arg3[%c0_36, %c0_37, %c0_38] : memref<2x32x256xf32, #tpu.memory_space<vmem>>, vector<2x32x256xf32>
    %60 = vector.extract_strided_slice %48 {offsets = [0, 96, 0], sizes = [2, 32, 1], strides = [1, 1, 1]} : vector<2x128x1xf32> to vector<2x32x1xf32>
    %61 = vector.broadcast %60 : vector<2x32x1xf32> to vector<2x32x256xf32>
    %62 = arith.mulf %59, %61 : vector<2x32x256xf32>
    %c0_39 = arith.constant 0 : index
    %c96 = arith.constant 96 : index
    %c0_40 = arith.constant 0 : index
    %63 = vector.load %arg7[%c0_39, %c96, %c0_40] : memref<2x128x256xf32, #tpu.memory_space<vmem>>, vector<2x32x256xf32>
    tpu.vector_store %arg7[%c0_39, %c96, %c0_40], %62 {strides = array<i32>} : memref<2x128x256xf32, #tpu.memory_space<vmem>>, vector<2x32x256xf32>,
    return
  }
  func.func @transform_0(%arg0: i32) -> (i32, i32, i32) {
    %c0_i32 = arith.constant 0 : i32
    %c0_i32_0 = arith.constant 0 : i32
    %c0_i32_1 = arith.constant 0 : i32
    return %arg0, %c0_i32, %c0_i32_0 : i32, i32, i32
  }
  func.func @transform_1(%arg0: i32) -> (i32, i32, i32) {
    %c0_i32 = arith.constant 0 : i32
    %c0_i32_0 = arith.constant 0 : i32
    %c0_i32_1 = arith.constant 0 : i32
    return %arg0, %c0_i32, %c0_i32_0 : i32, i32, i32
  }
  func.func @transform_2(%arg0: i32) -> (i32, i32, i32) {
    %c0_i32 = arith.constant 0 : i32
    %c0_i32_0 = arith.constant 0 : i32
    %c0_i32_1 = arith.constant 0 : i32
    return %arg0, %c0_i32, %c0_i32_0 : i32, i32, i32
  }
  func.func @transform_3(%arg0: i32) -> (i32, i32) {
    %c0_i32 = arith.constant 0 : i32
    %c0_i32_0 = arith.constant 0 : i32
    %c0_i32_1 = arith.constant 0 : i32
    return %c0_i32, %c0_i32_0 : i32, i32
  }
  func.func @transform_4(%arg0: i32) -> (i32, i32) {
    %c0_i32 = arith.constant 0 : i32
    %c0_i32_0 = arith.constant 0 : i32
    %c0_i32_1 = arith.constant 0 : i32
    return %c0_i32, %c0_i32_0 : i32, i32
  }
  func.func @transform_5(%arg0: i32) -> (i32, i32) {
    %c0_i32 = arith.constant 0 : i32
    %c0_i32_0 = arith.constant 0 : i32
    %c0_i32_1 = arith.constant 0 : i32
    return %c0_i32, %c0_i32_0 : i32, i32
  }
  func.func @transform_6(%arg0: i32) -> (i32, i32, i32) {
    %c0_i32 = arith.constant 0 : i32
    %c0_i32_0 = arith.constant 0 : i32
    %c0_i32_1 = arith.constant 0 : i32
    return %arg0, %c0_i32, %c0_i32_0 : i32, i32, i32
  }
}

</mosaic_0001>

<llo_original>
// kernel: tpu_custom_call.1
$region0: #{tpu_custom_call.1}
  #allocation0 [shape = 'u32[]', space=smem, size = 0x4, offset = 0x4, fixed_abs, tag = 'smem constant byte address 0x4 - core index']
  #allocation1 [shape = 'u32[144,128]{1,0:T(1,128)}', space=vmem, size = 0x12000, scoped, tag = 'internal scratch']
  #allocation2 [shape = 'f32[1,1]{1,0:T(1,128)S(6)}', space=smem, size = 0x200, scoped, tag = 'scoped memory for tpu_custom_call.1']
  %s0 = inlined_call_operand.hbm [shape: f32[2,64,256], index: 0, kind: input, shape index: {}]
  %s1 = inlined_call_operand.hbm [shape: f32[2,32,256], index: 1, kind: input, shape index: {}]
  %s2 = inlined_call_operand.hbm [shape: f32[2,32,256], index: 2, kind: input, shape index: {}]
  %s3 = inlined_call_operand.hbm [shape: f32[8,128], index: 3, kind: input, shape index: {}]
  %s4 = inlined_call_operand.hbm [shape: f32[128,8], index: 4, kind: input, shape index: {}]
  %s5 = inlined_call_operand.<no memory space> [shape: f32[1,1], index: 5, kind: input, shape index: {}]
  %s6 = inlined_call_operand.hbm [shape: f32[2,128,256], index: 6, kind: output, shape index: {}]
  %s7 = sld [smem:[#allocation0]]
  $region54: #{tpu_custom_call.1} parent=0
    _
  %s9 = ssub.s32 1, %s7
  %s10 = scalar_select 0, %s9, %s7
  %11 = sst [smem:[#allocation2]] %s5
  $region1: #{tpu_custom_call.1} parent=0
    #allocation3 [shape = 'u8[131072]{0}', space=vmem, size = 0x20000, scoped, tag = 'input window, operand 0, single buffered']
    #allocation4 [shape = 's32[1]{0}', space=sflag, size = 0x4, scoped, tag = 'scoped memory for tpu_custom_call.1']
    #allocation5 [shape = 's32[1]{0}', space=sflag, size = 0x4, scoped, tag = 'scoped memory for tpu_custom_call.1']
    #allocation6 [shape = 'u8[65536]{0}', space=vmem, size = 0x10000, scoped, tag = 'input window, operand 1, single buffered']
    #allocation7 [shape = 's32[1]{0}', space=sflag, size = 0x4, scoped, tag = 'scoped memory for tpu_custom_call.1']
    #allocation8 [shape = 'u8[65536]{0}', space=vmem, size = 0x10000, scoped, tag = 'input window, operand 2, single buffered']
    #allocation9 [shape = 'u8[4096]{0}', space=vmem, size = 0x1000, scoped, tag = 'input window, operand 3, single buffered']
    #allocation10 [shape = 's32[1]{0}', space=sflag, size = 0x4, scoped, tag = 'scoped memory for tpu_custom_call.1']
    #allocation11 [shape = 'u8[65536]{0}', space=vmem, size = 0x10000, scoped, tag = 'input window, operand 4, single buffered']
    #allocation12 [shape = 'u8[262144]{0}', space=vmem, size = 0x40000, scoped, tag = 'output window, operand 0, single buffered']
    %12 = vsyncpa [#allocation4], 0
    %13 = vsyncpa [#allocation7], 0
    %14 = vsyncpa [#allocation10], 0
    %15 = vsyncpa [#allocation5], 0
    // Predicated region
    $region2: #{tpu_custom_call.1} parent=1 // pred_check
      _
    $region3: #{tpu_custom_call.1} parent=1 // pred_check_branch
      %17 = sbr.rel (0) target = $region5
    $region4: #{tpu_custom_call.1} parent=1 // pred_region
      %s19 = ssub.s32 4096, 4096
      %20 = vsyncadd [#allocation4], %s19
      %s21 = sshll.u32 [#allocation3], 4
      %s22 = int_to_ptr.vmem [resolvable:$true] %s21
      %27 = dma.hbm_to_vmem [thread:$0]  %s0, 4096, %s22, [#allocation4], 256, 256, 16
    $region5: #{tpu_custom_call.1} parent=1 // pred_fallthru
      _
    // Predicated region
    $region6: #{tpu_custom_call.1} parent=1 // pred_check
      _
    $region7: #{tpu_custom_call.1} parent=1 // pred_check_branch
      %29 = sbr.rel (0) target = $region9
    $region8: #{tpu_custom_call.1} parent=1 // pred_region
      %s31 = ssub.s32 2048, 2048
      %32 = vsyncadd [#allocation7], %s31
      %s33 = sshll.u32 [#allocation6], 4
      %s34 = int_to_ptr.vmem [resolvable:$true] %s33
      %39 = dma.hbm_to_vmem [thread:$0]  %s1, 2048, %s34, [#allocation7], 256, 256, 16
    $region9: #{tpu_custom_call.1} parent=1 // pred_fallthru
      _
    // Predicated region
    $region10: #{tpu_custom_call.1} parent=1 // pred_check
      _
    $region11: #{tpu_custom_call.1} parent=1 // pred_check_branch
      %41 = sbr.rel (0) target = $region13
    $region12: #{tpu_custom_call.1} parent=1 // pred_region
      %s43 = ssub.s32 2048, 2048
      %44 = vsyncadd [#allocation7], %s43
      %s45 = sshll.u32 [#allocation8], 4
      %s46 = int_to_ptr.vmem [resolvable:$true] %s45
      %51 = dma.hbm_to_vmem [thread:$0]  %s2, 2048, %s46, [#allocation7], 256, 256, 16
    $region13: #{tpu_custom_call.1} parent=1 // pred_fallthru
      _
    // Predicated region
    $region14: #{tpu_custom_call.1} parent=1 // pred_check
      _
    $region15: #{tpu_custom_call.1} parent=1 // pred_check_branch
      %53 = sbr.rel (0) target = $region17
    $region16: #{tpu_custom_call.1} parent=1 // pred_region
      %s55 = ssub.s32 128, 128
      %56 = vsyncadd [#allocation10], %s55
      %s58 = sshll.u32 [#allocation9], 4
      %s59 = int_to_ptr.vmem [resolvable:$true] %s58
      %61 = dma.hbm_to_vmem [thread:$0]  %s3, 128, %s59, [#allocation10]
    $region17: #{tpu_custom_call.1} parent=1 // pred_fallthru
      _
    // Predicated region
    $region18: #{tpu_custom_call.1} parent=1 // pred_check
      _
    $region19: #{tpu_custom_call.1} parent=1 // pred_check_branch
      %63 = sbr.rel (0) target = $region21
    $region20: #{tpu_custom_call.1} parent=1 // pred_region
      %s65 = ssub.s32 2048, 2048
      %66 = vsyncadd [#allocation10], %s65
      %s67 = sshll.u32 [#allocation11], 4
      %s68 = int_to_ptr.vmem [resolvable:$true] %s67
      %73 = dma.hbm_to_vmem [thread:$0]  %s4, 2048, %s68, [#allocation10], 128, 128, 8
    $region21: #{tpu_custom_call.1} parent=1 // pred_fallthru
      _
    // Predicated region
    $region22: #{tpu_custom_call.1} parent=1 // pred_check
      _
    $region23: #{tpu_custom_call.1} parent=1 // pred_check_branch
      %75 = sbr.rel (0) target = $region25
    $region24: #{tpu_custom_call.1} parent=1 // pred_region
      _
    $region25: #{tpu_custom_call.1} parent=1 // pred_fallthru
      _
    // Predicated region
    $region26: #{tpu_custom_call.1} parent=1 // pred_check
      _
    $region27: #{tpu_custom_call.1} parent=1 // pred_check_branch
      %77 = sbr.rel (0) target = $region29
    $region28: #{tpu_custom_call.1} parent=1 // pred_region
      %78 = dma.done [#allocation4], 4096
    $region29: #{tpu_custom_call.1} parent=1 // pred_fallthru
      _
    // Predicated region
    $region30: #{tpu_custom_call.1} parent=1 // pred_check
      _
    $region31: #{tpu_custom_call.1} parent=1 // pred_check_branch
      %80 = sbr.rel (0) target = $region33
    $region32: #{tpu_custom_call.1} parent=1 // pred_region
      %81 = dma.done [#allocation7], 2048
    $region33: #{tpu_custom_call.1} parent=1 // pred_fallthru
      _
    // Predicated region
    $region34: #{tpu_custom_call.1} parent=1 // pred_check
      _
    $region35: #{tpu_custom_call.1} parent=1 // pred_check_branch
      %83 = sbr.rel (0) target = $region37
    $region36: #{tpu_custom_call.1} parent=1 // pred_region
      %84 = dma.done [#allocation7], 2048
    $region37: #{tpu_custom_call.1} parent=1 // pred_fallthru
      _
    // Predicated region
    $region38: #{tpu_custom_call.1} parent=1 // pred_check
      _
    $region39: #{tpu_custom_call.1} parent=1 // pred_check_branch
      %86 = sbr.rel (0) target = $region41
    $region40: #{tpu_custom_call.1} parent=1 // pred_region
      %87 = dma.done [#allocation10], 128
    $region41: #{tpu_custom_call.1} parent=1 // pred_fallthru
      _
    // Predicated region
    $region42: #{tpu_custom_call.1} parent=1 // pred_check
      _
    $region43: #{tpu_custom_call.1} parent=1 // pred_check_branch
      %89 = sbr.rel (0) target = $region45
    $region44: #{tpu_custom_call.1} parent=1 // pred_region
      %90 = dma.done [#allocation10], 2048
    $region45: #{tpu_custom_call.1} parent=1 // pred_fallthru
      _
    %v91 = vld [vmem:[#allocation9] sm:$0xff]
    %v92 = vld [vmem:[#allocation11] sm:$0xff]
    %v93 = vld [vmem:[#allocation11 + $0x8] sm:$0xff]
    %v94 = vld [vmem:[#allocation11 + $0x10] sm:$0xff]
    %v95 = vld [vmem:[#allocation11 + $0x18] sm:$0xff]
    %v96 = vld [vmem:[#allocation11 + $0x20] sm:$0xff]
    %v97 = vld [vmem:[#allocation11 + $0x28] sm:$0xff]
    %v98 = vld [vmem:[#allocation11 + $0x30] sm:$0xff]
    %v99 = vld [vmem:[#allocation11 + $0x38] sm:$0xff]
    %v100 = vld [vmem:[#allocation11 + $0x40] sm:$0xff]
    %v101 = vld [vmem:[#allocation11 + $0x48] sm:$0xff]
    %v102 = vld [vmem:[#allocation11 + $0x50] sm:$0xff]
    %v103 = vld [vmem:[#allocation11 + $0x58] sm:$0xff]
    %v104 = vld [vmem:[#allocation11 + $0x60] sm:$0xff]
    %v105 = vld [vmem:[#allocation11 + $0x68] sm:$0xff]
    %v106 = vld [vmem:[#allocation11 + $0x70] sm:$0xff]
    %v107 = vld [vmem:[#allocation11 + $0x78] sm:$0xff]
    %s108 = sld [smem:[#allocation2]]
    %v109 = vld [vmem:[#allocation3] sm:$0xff]
    %v110 = vld [vmem:[#allocation3 + $0x8] sm:$0xff]
    %v111 = vld [vmem:[#allocation3 + $0x10] sm:$0xff]
    %v112 = vld [vmem:[#allocation3 + $0x18] sm:$0xff]
    %v113 = vld [vmem:[#allocation3 + $0x20] sm:$0xff]
    %v114 = vld [vmem:[#allocation3 + $0x28] sm:$0xff]
    %v115 = vld [vmem:[#allocation3 + $0x30] sm:$0xff]
    %v116 = vld [vmem:[#allocation3 + $0x38] sm:$0xff]
    %v117 = vld [vmem:[#allocation3 + $0x40] sm:$0xff]
    %v118 = vld [vmem:[#allocation3 + $0x48] sm:$0xff]
    %v119 = vld [vmem:[#allocation3 + $0x50] sm:$0xff]
    %v120 = vld [vmem:[#allocation3 + $0x58] sm:$0xff]
    %v121 = vld [vmem:[#allocation3 + $0x60] sm:$0xff]
    %v122 = vld [vmem:[#allocation3 + $0x68] sm:$0xff]
    %v123 = vld [vmem:[#allocation3 + $0x70] sm:$0xff]
    %v124 = vld [vmem:[#allocation3 + $0x78] sm:$0xff]
    %v125 = vld [vmem:[#allocation3 + $0x80] sm:$0xff]
    %v126 = vld [vmem:[#allocation3 + $0x88] sm:$0xff]
    %v127 = vld [vmem:[#allocation3 + $0x90] sm:$0xff]
    %v128 = vld [vmem:[#allocation3 + $0x98] sm:$0xff]
    %v129 = vld [vmem:[#allocation3 + $0xa0] sm:$0xff]
    %v130 = vld [vmem:[#allocation3 + $0xa8] sm:$0xff]
    %v131 = vld [vmem:[#allocation3 + $0xb0] sm:$0xff]
    %v132 = vld [vmem:[#allocation3 + $0xb8] sm:$0xff]
    %v133 = vld [vmem:[#allocation3 + $0xc0] sm:$0xff]
    %v134 = vld [vmem:[#allocation3 + $0xc8] sm:$0xff]
    %v135 = vld [vmem:[#allocation3 + $0xd0] sm:$0xff]
    %v136 = vld [vmem:[#allocation3 + $0xd8] sm:$0xff]
    %v137 = vld [vmem:[#allocation3 + $0xe0] sm:$0xff]
    %v138 = vld [vmem:[#allocation3 + $0xe8] sm:$0xff]
    %v139 = vld [vmem:[#allocation3 + $0xf0] sm:$0xff]
    %v140 = vld [vmem:[#allocation3 + $0xf8] sm:$0xff]
    %141 = vmatprep.subr.mxu0 0.0
    %142 = vmatpush1.msra.mxu0 1.0
    %143 = vmatprep.subr.mxu0 0.0
    %144 = vmatpush1.msra.mxu0 1.0
    %145 = vmatprep.subr.mxu0 0.0
    %146 = vmatpush1.msra.mxu0 1.0
    %147 = vmatprep.subr.mxu0 0.0
    %148 = vmatpush1.msra.mxu0 1.0
    %149 = vmatprep.subr.mxu0 0.0
    %150 = vmatpush1.msra.mxu0 1.0
    %151 = vmatprep.subr.mxu0 0.0
    %152 = vmatpush1.msra.mxu0 1.0
    %153 = vmatprep.subr.mxu0 0.0
    %154 = vmatpush1.msra.mxu0 1.0
    %155 = vmatprep.subr.mxu0 0.0
    %156 = vmatpush1.msra.mxu0 1.0
    %157 = vmatprep.subr.mxu0 0.0
    %158 = vmatpush1.msra.mxu0 1.0
    %159 = vmatprep.subr.mxu0 0.0
    %160 = vmatpush1.msra.mxu0 1.0
    %161 = vmatprep.subr.mxu0 0.0
    %162 = vmatpush1.msra.mxu0 1.0
    %163 = vmatprep.subr.mxu0 0.0
    %164 = vmatpush1.msra.mxu0 1.0
    %165 = vmatprep.subr.mxu0 0.0
    %166 = vmatpush1.msra.mxu0 1.0
    %167 = vmatprep.subr.mxu0 0.0
    %168 = vmatpush1.msra.mxu0 1.0
    %169 = vmatprep.subr.mxu0 0.0
    %170 = vmatpush1.msra.mxu0 1.0
    %171 = vmatprep.subr.mxu0 0.0
    %172 = vmatpush1.msra.mxu0 1.0
    %173 = vmatprep.subr.mxu0 0.0
    %174 = vmatpush1.msra.mxu0 1.0
    %175 = vmatprep.subr.mxu0 0.0
    %176 = vmatpush1.msra.mxu0 1.0
    %177 = vmatprep.subr.mxu0 0.0
    %178 = vmatpush1.msra.mxu0 1.0
    %179 = vmatprep.subr.mxu0 0.0
    %180 = vmatpush1.msra.mxu0 1.0
    %181 = vmatprep.subr.mxu0 0.0
    %182 = vmatpush1.msra.mxu0 1.0
    %183 = vmatprep.subr.mxu0 0.0
    %184 = vmatpush1.msra.mxu0 1.0
    %185 = vmatprep.subr.mxu0 0.0
    %186 = vmatpush1.msra.mxu0 1.0
    %187 = vmatprep.subr.mxu0 0.0
    %188 = vmatpush1.msra.mxu0 1.0
    %189 = vmatprep.subr.mxu0 0.0
    %190 = vmatpush1.msra.mxu0 1.0
    %191 = vmatprep.subr.mxu0 0.0
    %192 = vmatpush1.msra.mxu0 1.0
    %193 = vmatprep.subr.mxu0 0.0
    %194 = vmatpush1.msra.mxu0 1.0
    %195 = vmatprep.subr.mxu0 0.0
    %196 = vmatpush1.msra.mxu0 1.0
    %197 = vmatprep.subr.mxu0 0.0
    %198 = vmatpush1.msra.mxu0 1.0
    %199 = vmatprep.subr.mxu0 0.0
    %200 = vmatpush1.msra.mxu0 1.0
    %201 = vmatprep.subr.mxu0 0.0
    %202 = vmatpush1.msra.mxu0 1.0
    %203 = vmatprep.subr.mxu0 0.0
    %204 = vmatpush1.msra.mxu0 1.0
    %205 = vmatprep.mubr.f32.mxu0 %v110
    %206 = vmatmul.mubr.f32.gmra.mrb[0].mxu0 %v109
    %v207 = vpop.f32.mrb[0].mxu0
    %v208 = vadd.f32 0.0, %v207
    %v209 = vpop.f32.mrb[0].mxu0
    %210 = vmatprep.mubr.f32.mxu0 %v112
    %211 = vmatmul.mubr.f32.gmra.mrb[0].mxu0 %v111
    %v212 = vpop.f32.mrb[0].mxu0
    %v213 = vadd.f32 0.0, %v212
    %v214 = vpop.f32.mrb[0].mxu0
    %215 = vmatprep.mubr.f32.mxu0 %v114
    %216 = vmatmul.mubr.f32.gmra.mrb[0].mxu0 %v113
    %v217 = vpop.f32.mrb[0].mxu0
    %v218 = vadd.f32 0.0, %v217
    %v219 = vpop.f32.mrb[0].mxu0
    %220 = vmatprep.mubr.f32.mxu0 %v116
    %221 = vmatmul.mubr.f32.gmra.mrb[0].mxu0 %v115
    %v222 = vpop.f32.mrb[0].mxu0
    %v223 = vadd.f32 0.0, %v222
    %v224 = vpop.f32.mrb[0].mxu0
    %225 = vmatprep.mubr.f32.mxu0 %v118
    %226 = vmatmul.mubr.f32.gmra.mrb[0].mxu0 %v117
    %v227 = vpop.f32.mrb[0].mxu0
    %v228 = vadd.f32 0.0, %v227
    %v229 = vpop.f32.mrb[0].mxu0
    %230 = vmatprep.mubr.f32.mxu0 %v120
    %231 = vmatmul.mubr.f32.gmra.mrb[0].mxu0 %v119
    %v232 = vpop.f32.mrb[0].mxu0
    %v233 = vadd.f32 0.0, %v232
    %v234 = vpop.f32.mrb[0].mxu0
    %235 = vmatprep.mubr.f32.mxu0 %v122
    %236 = vmatmul.mubr.f32.gmra.mrb[0].mxu0 %v121
    %v237 = vpop.f32.mrb[0].mxu0
    %v238 = vadd.f32 0.0, %v237
    %v239 = vpop.f32.mrb[0].mxu0
    %240 = vmatprep.mubr.f32.mxu0 %v124
    %241 = vmatmul.mubr.f32.gmra.mrb[0].mxu0 %v123
    %v242 = vpop.f32.mrb[0].mxu0
    %v243 = vadd.f32 0.0, %v242
    %v244 = vpop.f32.mrb[0].mxu0
    %245 = vmatprep.mubr.f32.mxu0 %v126
    %246 = vmatmul.mubr.f32.gmra.mrb[0].mxu0 %v125
    %v247 = vpop.f32.mrb[0].mxu0
    %v248 = vadd.f32 0.0, %v247
    %v249 = vpop.f32.mrb[0].mxu0
    %250 = vmatprep.mubr.f32.mxu0 %v128
    %251 = vmatmul.mubr.f32.gmra.mrb[0].mxu0 %v127
    %v252 = vpop.f32.mrb[0].mxu0
    %v253 = vadd.f32 0.0, %v252
    %v254 = vpop.f32.mrb[0].mxu0
    %255 = vmatprep.mubr.f32.mxu0 %v130
    %256 = vmatmul.mubr.f32.gmra.mrb[0].mxu0 %v129
    %v257 = vpop.f32.mrb[0].mxu0
    %v258 = vadd.f32 0.0, %v257
    %v259 = vpop.f32.mrb[0].mxu0
    %260 = vmatprep.mubr.f32.mxu0 %v132
    %261 = vmatmul.mubr.f32.gmra.mrb[0].mxu0 %v131
    %v262 = vpop.f32.mrb[0].mxu0
    %v263 = vadd.f32 0.0, %v262
    %v264 = vpop.f32.mrb[0].mxu0
    %265 = vmatprep.mubr.f32.mxu0 %v134
    %266 = vmatmul.mubr.f32.gmra.mrb[0].mxu0 %v133
    %v267 = vpop.f32.mrb[0].mxu0
    %v268 = vadd.f32 0.0, %v267
    %v269 = vpop.f32.mrb[0].mxu0
    %270 = vmatprep.mubr.f32.mxu0 %v136
    %271 = vmatmul.mubr.f32.gmra.mrb[0].mxu0 %v135
    %v272 = vpop.f32.mrb[0].mxu0
    %v273 = vadd.f32 0.0, %v272
    %v274 = vpop.f32.mrb[0].mxu0
    %275 = vmatprep.mubr.f32.mxu0 %v138
    %276 = vmatmul.mubr.f32.gmra.mrb[0].mxu0 %v137
    %v277 = vpop.f32.mrb[0].mxu0
    %v278 = vadd.f32 0.0, %v277
    %v279 = vpop.f32.mrb[0].mxu0
    %280 = vmatprep.mubr.f32.mxu0 %v140
    %281 = vmatmul.mubr.f32.gmra.mrb[0].mxu0 %v139
    %v282 = vpop.f32.mrb[0].mxu0
    %v283 = vadd.f32 0.0, %v282
    %v284 = vpop.f32.mrb[0].mxu0
    %285 = vdwg.mxu0
    %v286 = vld [vmem:[#allocation6] sm:$0xff]
    %v287 = vld [vmem:[#allocation6 + $0x8] sm:$0xff]
    %v288 = vld [vmem:[#allocation6 + $0x10] sm:$0xff]
    %v289 = vld [vmem:[#allocation6 + $0x18] sm:$0xff]
    %v290 = vld [vmem:[#allocation6 + $0x20] sm:$0xff]
    %v291 = vld [vmem:[#allocation6 + $0x28] sm:$0xff]
    %v292 = vld [vmem:[#allocation6 + $0x30] sm:$0xff]
    %v293 = vld [vmem:[#allocation6 + $0x38] sm:$0xff]
    %v294 = vld [vmem:[#allocation6 + $0x40] sm:$0xff]
    %v295 = vld [vmem:[#allocation6 + $0x48] sm:$0xff]
    %v296 = vld [vmem:[#allocation6 + $0x50] sm:$0xff]
    %v297 = vld [vmem:[#allocation6 + $0x58] sm:$0xff]
    %v298 = vld [vmem:[#allocation6 + $0x60] sm:$0xff]
    %v299 = vld [vmem:[#allocation6 + $0x68] sm:$0xff]
    %v300 = vld [vmem:[#allocation6 + $0x70] sm:$0xff]
    %v301 = vld [vmem:[#allocation6 + $0x78] sm:$0xff]
    %302 = vmatprep.subr.mxu0 0.0
    %303 = vmatpush1.msra.mxu0 1.0
    %304 = vmatprep.subr.mxu0 0.0
    %305 = vmatpush1.msra.mxu0 1.0
    %306 = vmatprep.subr.mxu0 0.0
    %307 = vmatpush1.msra.mxu0 1.0
    %308 = vmatprep.subr.mxu0 0.0
    %309 = vmatpush1.msra.mxu0 1.0
    %310 = vmatprep.subr.mxu0 0.0
    %311 = vmatpush1.msra.mxu0 1.0
    %312 = vmatprep.subr.mxu0 0.0
    %313 = vmatpush1.msra.mxu0 1.0
    %314 = vmatprep.subr.mxu0 0.0
    %315 = vmatpush1.msra.mxu0 1.0
    %316 = vmatprep.subr.mxu0 0.0
    %317 = vmatpush1.msra.mxu0 1.0
    %318 = vmatprep.subr.mxu0 0.0
    %319 = vmatpush1.msra.mxu0 1.0
    %320 = vmatprep.subr.mxu0 0.0
    %321 = vmatpush1.msra.mxu0 1.0
    %322 = vmatprep.subr.mxu0 0.0
    %323 = vmatpush1.msra.mxu0 1.0
    %324 = vmatprep.subr.mxu0 0.0
    %325 = vmatpush1.msra.mxu0 1.0
    %326 = vmatprep.subr.mxu0 0.0
    %327 = vmatpush1.msra.mxu0 1.0
    %328 = vmatprep.subr.mxu0 0.0
    %329 = vmatpush1.msra.mxu0 1.0
    %330 = vmatprep.subr.mxu0 0.0
    %331 = vmatpush1.msra.mxu0 1.0
    %332 = vmatprep.subr.mxu0 0.0
    %333 = vmatpush1.msra.mxu0 1.0
    %334 = vmatprep.subr.mxu0 0.0
    %335 = vmatpush1.msra.mxu0 1.0
    %336 = vmatprep.subr.mxu0 0.0
    %337 = vmatpush1.msra.mxu0 1.0
    %338 = vmatprep.subr.mxu0 0.0
    %339 = vmatpush1.msra.mxu0 1.0
    %340 = vmatprep.subr.mxu0 0.0
    %341 = vmatpush1.msra.mxu0 1.0
    %342 = vmatprep.subr.mxu0 0.0
    %343 = vmatpush1.msra.mxu0 1.0
    %344 = vmatprep.subr.mxu0 0.0
    %345 = vmatpush1.msra.mxu0 1.0
    %346 = vmatprep.subr.mxu0 0.0
    %347 = vmatpush1.msra.mxu0 1.0
    %348 = vmatprep.subr.mxu0 0.0
    %349 = vmatpush1.msra.mxu0 1.0
    %350 = vmatprep.subr.mxu0 0.0
    %351 = vmatpush1.msra.mxu0 1.0
    %352 = vmatprep.subr.mxu0 0.0
    %353 = vmatpush1.msra.mxu0 1.0
    %354 = vmatprep.subr.mxu0 0.0
    %355 = vmatpush1.msra.mxu0 1.0
    %356 = vmatprep.subr.mxu0 0.0
    %357 = vmatpush1.msra.mxu0 1.0
    %358 = vmatprep.subr.mxu0 0.0
    %359 = vmatpush1.msra.mxu0 1.0
    %360 = vmatprep.subr.mxu0 0.0
    %361 = vmatpush1.msra.mxu0 1.0
    %362 = vmatprep.subr.mxu0 0.0
    %363 = vmatpush1.msra.mxu0 1.0
    %364 = vmatprep.subr.mxu0 0.0
    %365 = vmatpush1.msra.mxu0 1.0
    %366 = vmatprep.mubr.f32.mxu0 %v287
    %367 = vmatmul.mubr.f32.gmra.mrb[0].mxu0 %v286
    %v368 = vpop.f32.mrb[0].mxu0
    %v369 = vadd.f32 0.0, %v368
    %v370 = vpop.f32.mrb[0].mxu0
    %371 = vmatprep.mubr.f32.mxu0 %v289
    %372 = vmatmul.mubr.f32.gmra.mrb[0].mxu0 %v288
    %v373 = vpop.f32.mrb[0].mxu0
    %v374 = vadd.f32 0.0, %v373
    %v375 = vpop.f32.mrb[0].mxu0
    %376 = vmatprep.mubr.f32.mxu0 %v291
    %377 = vmatmul.mubr.f32.gmra.mrb[0].mxu0 %v290
    %v378 = vpop.f32.mrb[0].mxu0
    %v379 = vadd.f32 0.0, %v378
    %v380 = vpop.f32.mrb[0].mxu0
    %381 = vmatprep.mubr.f32.mxu0 %v293
    %382 = vmatmul.mubr.f32.gmra.mrb[0].mxu0 %v292
    %v383 = vpop.f32.mrb[0].mxu0
    %v384 = vadd.f32 0.0, %v383
    %v385 = vpop.f32.mrb[0].mxu0
    %386 = vmatprep.mubr.f32.mxu0 %v295
    %387 = vmatmul.mubr.f32.gmra.mrb[0].mxu0 %v294
    %v388 = vpop.f32.mrb[0].mxu0
    %v389 = vadd.f32 0.0, %v388
    %v390 = vpop.f32.mrb[0].mxu0
    %391 = vmatprep.mubr.f32.mxu0 %v297
    %392 = vmatmul.mubr.f32.gmra.mrb[0].mxu0 %v296
    %v393 = vpop.f32.mrb[0].mxu0
    %v394 = vadd.f32 0.0, %v393
    %v395 = vpop.f32.mrb[0].mxu0
    %396 = vmatprep.mubr.f32.mxu0 %v299
    %397 = vmatmul.mubr.f32.gmra.mrb[0].mxu0 %v298
    %v398 = vpop.f32.mrb[0].mxu0
    %v399 = vadd.f32 0.0, %v398
    %v400 = vpop.f32.mrb[0].mxu0
    %401 = vmatprep.mubr.f32.mxu0 %v301
    %402 = vmatmul.mubr.f32.gmra.mrb[0].mxu0 %v300
    %v403 = vpop.f32.mrb[0].mxu0
    %v404 = vadd.f32 0.0, %v403
    %v405 = vpop.f32.mrb[0].mxu0
    %406 = vdwg.mxu0
    %v407 = vld [vmem:[#allocation8] sm:$0xff]
    %v408 = vld [vmem:[#allocation8 + $0x8] sm:$0xff]
    %v409 = vld [vmem:[#allocation8 + $0x10] sm:$0xff]
    %v410 = vld [vmem:[#allocation8 + $0x18] sm:$0xff]
    %v411 = vld [vmem:[#allocation8 + $0x20] sm:$0xff]
    %v412 = vld [vmem:[#allocation8 + $0x28] sm:$0xff]
    %v413 = vld [vmem:[#allocation8 + $0x30] sm:$0xff]
    %v414 = vld [vmem:[#allocation8 + $0x38] sm:$0xff]
    %v415 = vld [vmem:[#allocation8 + $0x40] sm:$0xff]
    %v416 = vld [vmem:[#allocation8 + $0x48] sm:$0xff]
    %v417 = vld [vmem:[#allocation8 + $0x50] sm:$0xff]
    %v418 = vld [vmem:[#allocation8 + $0x58] sm:$0xff]
    %v419 = vld [vmem:[#allocation8 + $0x60] sm:$0xff]
    %v420 = vld [vmem:[#allocation8 + $0x68] sm:$0xff]
    %v421 = vld [vmem:[#allocation8 + $0x70] sm:$0xff]
    %v422 = vld [vmem:[#allocation8 + $0x78] sm:$0xff]
    %423 = vmatprep.subr.mxu0 0.0
    %424 = vmatpush1.msra.mxu0 1.0
    %425 = vmatprep.subr.mxu0 0.0
    %426 = vmatpush1.msra.mxu0 1.0
    %427 = vmatprep.subr.mxu0 0.0
    %428 = vmatpush1.msra.mxu0 1.0
    %429 = vmatprep.subr.mxu0 0.0
    %430 = vmatpush1.msra.mxu0 1.0
    %431 = vmatprep.subr.mxu0 0.0
    %432 = vmatpush1.msra.mxu0 1.0
    %433 = vmatprep.subr.mxu0 0.0
    %434 = vmatpush1.msra.mxu0 1.0
    %435 = vmatprep.subr.mxu0 0.0
    %436 = vmatpush1.msra.mxu0 1.0
    %437 = vmatprep.subr.mxu0 0.0
    %438 = vmatpush1.msra.mxu0 1.0
    %439 = vmatprep.subr.mxu0 0.0
    %440 = vmatpush1.msra.mxu0 1.0
    %441 = vmatprep.subr.mxu0 0.0
    %442 = vmatpush1.msra.mxu0 1.0
    %443 = vmatprep.subr.mxu0 0.0
    %444 = vmatpush1.msra.mxu0 1.0
    %445 = vmatprep.subr.mxu0 0.0
    %446 = vmatpush1.msra.mxu0 1.0
    %447 = vmatprep.subr.mxu0 0.0
    %448 = vmatpush1.msra.mxu0 1.0
    %449 = vmatprep.subr.mxu0 0.0
    %450 = vmatpush1.msra.mxu0 1.0
    %451 = vmatprep.subr.mxu0 0.0
    %452 = vmatpush1.msra.mxu0 1.0
    %453 = vmatprep.subr.mxu0 0.0
    %454 = vmatpush1.msra.mxu0 1.0
    %455 = vmatprep.subr.mxu0 0.0
    %456 = vmatpush1.msra.mxu0 1.0
    %457 = vmatprep.subr.mxu0 0.0
    %458 = vmatpush1.msra.mxu0 1.0
    %459 = vmatprep.subr.mxu0 0.0
    %460 = vmatpush1.msra.mxu0 1.0
    %461 = vmatprep.subr.mxu0 0.0
    %462 = vmatpush1.msra.mxu0 1.0
    %463 = vmatprep.subr.mxu0 0.0
    %464 = vmatpush1.msra.mxu0 1.0
    %465 = vmatprep.subr.mxu0 0.0
    %466 = vmatpush1.msra.mxu0 1.0
    %467 = vmatprep.subr.mxu0 0.0
    %468 = vmatpush1.msra.mxu0 1.0
    %469 = vmatprep.subr.mxu0 0.0
    %470 = vmatpush1.msra.mxu0 1.0
    %471 = vmatprep.subr.mxu0 0.0
    %472 = vmatpush1.msra.mxu0 1.0
    %473 = vmatprep.subr.mxu0 0.0
    %474 = vmatpush1.msra.mxu0 1.0
    %475 = vmatprep.subr.mxu0 0.0
    %476 = vmatpush1.msra.mxu0 1.0
    %477 = vmatprep.subr.mxu0 0.0
    %478 = vmatpush1.msra.mxu0 1.0
    %479 = vmatprep.subr.mxu0 0.0
    %480 = vmatpush1.msra.mxu0 1.0
    %481 = vmatprep.subr.mxu0 0.0
    %482 = vmatpush1.msra.mxu0 1.0
    %483 = vmatprep.subr.mxu0 0.0
    %484 = vmatpush1.msra.mxu0 1.0
    %485 = vmatprep.subr.mxu0 0.0
    %486 = vmatpush1.msra.mxu0 1.0
    %487 = vmatprep.mubr.f32.mxu0 %v408
    %488 = vmatmul.mubr.f32.gmra.mrb[0].mxu0 %v407
    %v489 = vpop.f32.mrb[0].mxu0
    %v490 = vadd.f32 0.0, %v489
    %v491 = vpop.f32.mrb[0].mxu0
    %492 = vmatprep.mubr.f32.mxu0 %v410
    %493 = vmatmul.mubr.f32.gmra.mrb[0].mxu0 %v409
    %v494 = vpop.f32.mrb[0].mxu0
    %v495 = vadd.f32 0.0, %v494
    %v496 = vpop.f32.mrb[0].mxu0
    %497 = vmatprep.mubr.f32.mxu0 %v412
    %498 = vmatmul.mubr.f32.gmra.mrb[0].mxu0 %v411
    %v499 = vpop.f32.mrb[0].mxu0
    %v500 = vadd.f32 0.0, %v499
    %v501 = vpop.f32.mrb[0].mxu0
    %502 = vmatprep.mubr.f32.mxu0 %v414
    %503 = vmatmul.mubr.f32.gmra.mrb[0].mxu0 %v413
    %v504 = vpop.f32.mrb[0].mxu0
    %v505 = vadd.f32 0.0, %v504
    %v506 = vpop.f32.mrb[0].mxu0
    %507 = vmatprep.mubr.f32.mxu0 %v416
    %508 = vmatmul.mubr.f32.gmra.mrb[0].mxu0 %v415
    %v509 = vpop.f32.mrb[0].mxu0
    %v510 = vadd.f32 0.0, %v509
    %v511 = vpop.f32.mrb[0].mxu0
    %512 = vmatprep.mubr.f32.mxu0 %v418
    %513 = vmatmul.mubr.f32.gmra.mrb[0].mxu0 %v417
    %v514 = vpop.f32.mrb[0].mxu0
    %v515 = vadd.f32 0.0, %v514
    %v516 = vpop.f32.mrb[0].mxu0
    %517 = vmatprep.mubr.f32.mxu0 %v420
    %518 = vmatmul.mubr.f32.gmra.mrb[0].mxu0 %v419
    %v519 = vpop.f32.mrb[0].mxu0
    %v520 = vadd.f32 0.0, %v519
    %v521 = vpop.f32.mrb[0].mxu0
    %522 = vmatprep.mubr.f32.mxu0 %v422
    %523 = vmatmul.mubr.f32.gmra.mrb[0].mxu0 %v421
    %v524 = vpop.f32.mrb[0].mxu0
    %v525 = vadd.f32 0.0, %v524
    %v526 = vpop.f32.mrb[0].mxu0
    %527 = vdwg.mxu0
    %544 = vrot.lane.b32.xlu0 %v248, 1
    %v545 = vpop.permute.xlu0 %544
    %546 = vrot.lane.b32.xlu0 %v253, 1
    %v547 = vpop.permute.xlu0 %546
    %548 = vrot.lane.b32.xlu0 %v258, 1
    %v549 = vpop.permute.xlu0 %548
    %550 = vrot.lane.b32.xlu0 %v263, 1
    %v551 = vpop.permute.xlu0 %550
    %552 = vrot.lane.b32.xlu0 %v268, 1
    %v553 = vpop.permute.xlu0 %552
    %554 = vrot.lane.b32.xlu0 %v273, 1
    %v555 = vpop.permute.xlu0 %554
    %556 = vrot.lane.b32.xlu0 %v278, 1
    %v557 = vpop.permute.xlu0 %556
    %558 = vrot.lane.b32.xlu0 %v283, 1
    %v559 = vpop.permute.xlu0 %558
    %560 = vrot.lane.b32.xlu0 %v389, 1
    %v561 = vpop.permute.xlu0 %560
    %562 = vrot.lane.b32.xlu0 %v394, 1
    %v563 = vpop.permute.xlu0 %562
    %564 = vrot.lane.b32.xlu0 %v399, 1
    %v565 = vpop.permute.xlu0 %564
    %566 = vrot.lane.b32.xlu0 %v404, 1
    %v567 = vpop.permute.xlu0 %566
    %568 = vrot.lane.b32.xlu0 %v510, 1
    %v569 = vpop.permute.xlu0 %568
    %570 = vrot.lane.b32.xlu0 %v515, 1
    %v571 = vpop.permute.xlu0 %570
    %572 = vrot.lane.b32.xlu0 %v520, 1
    %v573 = vpop.permute.xlu0 %572
    %574 = vrot.lane.b32.xlu0 %v525, 1
    %v575 = vpop.permute.xlu0 %574
    %vm592 = vcmask 7168
    %v593 = vsel %vm592, %v208, %v545
    %v594 = vsel %vm592, %v213, %v547
    %v595 = vsel %vm592, %v218, %v549
    %v596 = vsel %vm592, %v223, %v551
    %v597 = vsel %vm592, %v228, %v553
    %v598 = vsel %vm592, %v233, %v555
    %v599 = vsel %vm592, %v238, %v557
    %v600 = vsel %vm592, %v243, %v559
    %v601 = vsel %vm592, %v369, %v561
    %v602 = vsel %vm592, %v374, %v563
    %v603 = vsel %vm592, %v379, %v565
    %v604 = vsel %vm592, %v384, %v567
    %v605 = vsel %vm592, %v490, %v569
    %v606 = vsel %vm592, %v495, %v571
    %v607 = vsel %vm592, %v500, %v573
    %v608 = vsel %vm592, %v505, %v575
    %v609 = vmul.f32 %v593, 0.00390625
    %v610 = vmul.f32 %v594, 0.00390625
    %v611 = vmul.f32 %v595, 0.00390625
    %v612 = vmul.f32 %v596, 0.00390625
    %v613 = vmul.f32 %v597, 0.00390625
    %v614 = vmul.f32 %v598, 0.00390625
    %v615 = vmul.f32 %v599, 0.00390625
    %v616 = vmul.f32 %v600, 0.00390625
    %v617 = vmul.f32 %v601, 0.00390625
    %v618 = vmul.f32 %v602, 0.00390625
    %v619 = vmul.f32 %v603, 0.00390625
    %v620 = vmul.f32 %v604, 0.00390625
    %v621 = vmul.f32 %v605, 0.00390625
    %v622 = vmul.f32 %v606, 0.00390625
    %v623 = vmul.f32 %v607, 0.00390625
    %v624 = vmul.f32 %v608, 0.00390625
    %625 = vmatprep.subr.mxu0 0.0
    %626 = vmatpush1.msra.mxu0 %v609
    %627 = vmatprep.subr.mxu0 0.0
    %628 = vmatpush1.msra.mxu0 %v610
    %629 = vmatprep.subr.mxu0 0.0
    %630 = vmatpush1.msra.mxu0 %v611
    %631 = vmatprep.subr.mxu0 0.0
    %632 = vmatpush1.msra.mxu0 %v612
    %633 = vmatprep.subr.mxu0 0.0
    %634 = vmatpush1.msra.mxu0 %v613
    %635 = vmatprep.subr.mxu0 0.0
    %636 = vmatpush1.msra.mxu0 %v614
    %637 = vmatprep.subr.mxu0 0.0
    %638 = vmatpush1.msra.mxu0 %v615
    %639 = vmatprep.subr.mxu0 0.0
    %640 = vmatpush1.msra.mxu0 %v616
    %641 = vmatprep.subr.mxu0 0.0
    %642 = vmatpush1.msra.mxu0 %v617
    %643 = vmatprep.subr.mxu0 0.0
    %644 = vmatpush1.msra.mxu0 %v618
    %645 = vmatprep.subr.mxu0 0.0
    %646 = vmatpush1.msra.mxu0 %v619
    %647 = vmatprep.subr.mxu0 0.0
    %648 = vmatpush1.msra.mxu0 %v620
    %649 = vmatprep.subr.mxu0 0.0
    %650 = vmatpush1.msra.mxu0 %v621
    %651 = vmatprep.subr.mxu0 0.0
    %652 = vmatpush1.msra.mxu0 %v622
    %653 = vmatprep.subr.mxu0 0.0
    %654 = vmatpush1.msra.mxu0 %v623
    %655 = vmatprep.subr.mxu0 0.0
    %656 = vmatpush1.msra.mxu0 %v624
    %657 = vmatprep.subr.mxu0 0.0
    %658 = vmatpush1.msra.mxu0 0.0
    %659 = vmatprep.subr.mxu0 0.0
    %660 = vmatpush1.msra.mxu0 0.0
    %661 = vmatprep.subr.mxu0 0.0
    %662 = vmatpush1.msra.mxu0 0.0
    %663 = vmatprep.subr.mxu0 0.0
    %664 = vmatpush1.msra.mxu0 0.0
    %665 = vmatprep.subr.mxu0 0.0
    %666 = vmatpush1.msra.mxu0 0.0
    %667 = vmatprep.subr.mxu0 0.0
    %668 = vmatpush1.msra.mxu0 0.0
    %669 = vmatprep.subr.mxu0 0.0
    %670 = vmatpush1.msra.mxu0 0.0
    %671 = vmatprep.subr.mxu0 0.0
    %672 = vmatpush1.msra.mxu0 0.0
    %673 = vmatprep.subr.mxu0 0.0
    %674 = vmatpush1.msra.mxu0 0.0
    %675 = vmatprep.subr.mxu0 0.0
    %676 = vmatpush1.msra.mxu0 0.0
    %677 = vmatprep.subr.mxu0 0.0
    %678 = vmatpush1.msra.mxu0 0.0
    %679 = vmatprep.subr.mxu0 0.0
    %680 = vmatpush1.msra.mxu0 0.0
    %681 = vmatprep.subr.mxu0 0.0
    %682 = vmatpush1.msra.mxu0 0.0
    %683 = vmatprep.subr.mxu0 0.0
    %684 = vmatpush1.msra.mxu0 0.0
    %685 = vmatprep.subr.mxu0 0.0
    %686 = vmatpush1.msra.mxu0 0.0
    %687 = vmatprep.subr.mxu0 0.0
    %688 = vmatpush1.msra.mxu0 0.0
    %689 = vmatprep.mubr.f32.mxu0 0.0
    %690 = vmatmul.mubr.f32.gmra.mrb[0].mxu0 %v91
    %v691 = vpop.f32.mrb[0].mxu0
    %v692 = vadd.f32 0.0, %v691
    %v693 = vpop.f32.mrb[0].mxu0
    %694 = vdwg.mxu0
    %v695 = vmax.f32 %v692, 0.0
    %vm696 = vcmask 64512
    %v698 = vsel %vm696, %v92, 0
    %v701 = vsel %vm696, %v93, 0
    %v704 = vsel %vm696, %v94, 0
    %v707 = vsel %vm696, %v95, 0
    %v710 = vsel %vm696, %v96, 0
    %v713 = vsel %vm696, %v97, 0
    %v716 = vsel %vm696, %v98, 0
    %v719 = vsel %vm696, %v99, 0
    %v722 = vsel %vm696, %v100, 0
    %v725 = vsel %vm696, %v101, 0
    %v728 = vsel %vm696, %v102, 0
    %v731 = vsel %vm696, %v103, 0
    %v734 = vsel %vm696, %v104, 0
    %v737 = vsel %vm696, %v105, 0
    %v740 = vsel %vm696, %v106, 0
    %v743 = vsel %vm696, %v107, 0
    %745 = vmatprep.subr.mxu0 0.0
    %746 = vmatpush1.msra.mxu0 %v695
    %747 = vmatprep.subr.mxu0 0.0
    %748 = vmatpush1.msra.mxu0 0.0
    %749 = vmatprep.subr.mxu0 0.0
    %750 = vmatpush1.msra.mxu0 0.0
    %751 = vmatprep.subr.mxu0 0.0
    %752 = vmatpush1.msra.mxu0 0.0
    %753 = vmatprep.subr.mxu0 0.0
    %754 = vmatpush1.msra.mxu0 0.0
    %755 = vmatprep.subr.mxu0 0.0
    %756 = vmatpush1.msra.mxu0 0.0
    %757 = vmatprep.subr.mxu0 0.0
    %758 = vmatpush1.msra.mxu0 0.0
    %759 = vmatprep.subr.mxu0 0.0
    %760 = vmatpush1.msra.mxu0 0.0
    %761 = vmatprep.subr.mxu0 0.0
    %762 = vmatpush1.msra.mxu0 0.0
    %763 = vmatprep.subr.mxu0 0.0
    %764 = vmatpush1.msra.mxu0 0.0
    %765 = vmatprep.subr.mxu0 0.0
    %766 = vmatpush1.msra.mxu0 0.0
    %767 = vmatprep.subr.mxu0 0.0
    %768 = vmatpush1.msra.mxu0 0.0
    %769 = vmatprep.subr.mxu0 0.0
    %770 = vmatpush1.msra.mxu0 0.0
    %771 = vmatprep.subr.mxu0 0.0
    %772 = vmatpush1.msra.mxu0 0.0
    %773 = vmatprep.subr.mxu0 0.0
    %774 = vmatpush1.msra.mxu0 0.0
    %775 = vmatprep.subr.mxu0 0.0
    %776 = vmatpush1.msra.mxu0 0.0
    %777 = vmatprep.subr.mxu0 0.0
    %778 = vmatpush1.msra.mxu0 0.0
    %779 = vmatprep.subr.mxu0 0.0
    %780 = vmatpush1.msra.mxu0 0.0
    %781 = vmatprep.subr.mxu0 0.0
    %782 = vmatpush1.msra.mxu0 0.0
    %783 = vmatprep.subr.mxu0 0.0
    %784 = vmatpush1.msra.mxu0 0.0
    %785 = vmatprep.subr.mxu0 0.0
    %786 = vmatpush1.msra.mxu0 0.0
    %787 = vmatprep.subr.mxu0 0.0
    %788 = vmatpush1.msra.mxu0 0.0
    %789 = vmatprep.subr.mxu0 0.0
    %790 = vmatpush1.msra.mxu0 0.0
    %791 = vmatprep.subr.mxu0 0.0
    %792 = vmatpush1.msra.mxu0 0.0
    %793 = vmatprep.subr.mxu0 0.0
    %794 = vmatpush1.msra.mxu0 0.0
    %795 = vmatprep.subr.mxu0 0.0
    %796 = vmatpush1.msra.mxu0 0.0
    %797 = vmatprep.subr.mxu0 0.0
    %798 = vmatpush1.msra.mxu0 0.0
    %799 = vmatprep.subr.mxu0 0.0
    %800 = vmatpush1.msra.mxu0 0.0
    %801 = vmatprep.subr.mxu0 0.0
    %802 = vmatpush1.msra.mxu0 0.0
    %803 = vmatprep.subr.mxu0 0.0
    %804 = vmatpush1.msra.mxu0 0.0
    %805 = vmatprep.subr.mxu0 0.0
    %806 = vmatpush1.msra.mxu0 0.0
    %807 = vmatprep.subr.mxu0 0.0
    %808 = vmatpush1.msra.mxu0 0.0
    %809 = vmatprep.mubr.f32.mxu0 0.0
    %810 = vmatmul.mubr.f32.gmra.mrb[0].mxu0 %v698
    %v811 = vpop.f32.mrb[0].mxu0
    %v812 = vadd.f32 0.0, %v811
    %v813 = vpop.f32.mrb[0].mxu0
    %814 = vmatprep.mubr.f32.mxu0 0.0
    %815 = vmatmul.mubr.f32.gmra.mrb[0].mxu0 %v701
    %v816 = vpop.f32.mrb[0].mxu0
    %v817 = vadd.f32 0.0, %v816
    %v818 = vpop.f32.mrb[0].mxu0
    %819 = vmatprep.mubr.f32.mxu0 0.0
    %820 = vmatmul.mubr.f32.gmra.mrb[0].mxu0 %v704
    %v821 = vpop.f32.mrb[0].mxu0
    %v822 = vadd.f32 0.0, %v821
    %v823 = vpop.f32.mrb[0].mxu0
    %824 = vmatprep.mubr.f32.mxu0 0.0
    %825 = vmatmul.mubr.f32.gmra.mrb[0].mxu0 %v707
    %v826 = vpop.f32.mrb[0].mxu0
    %v827 = vadd.f32 0.0, %v826
    %v828 = vpop.f32.mrb[0].mxu0
    %829 = vmatprep.mubr.f32.mxu0 0.0
    %830 = vmatmul.mubr.f32.gmra.mrb[0].mxu0 %v710
    %v831 = vpop.f32.mrb[0].mxu0
    %v832 = vadd.f32 0.0, %v831
    %v833 = vpop.f32.mrb[0].mxu0
    %834 = vmatprep.mubr.f32.mxu0 0.0
    %835 = vmatmul.mubr.f32.gmra.mrb[0].mxu0 %v713
    %v836 = vpop.f32.mrb[0].mxu0
    %v837 = vadd.f32 0.0, %v836
    %v838 = vpop.f32.mrb[0].mxu0
    %839 = vmatprep.mubr.f32.mxu0 0.0
    %840 = vmatmul.mubr.f32.gmra.mrb[0].mxu0 %v716
    %v841 = vpop.f32.mrb[0].mxu0
    %v842 = vadd.f32 0.0, %v841
    %v843 = vpop.f32.mrb[0].mxu0
    %844 = vmatprep.mubr.f32.mxu0 0.0
    %845 = vmatmul.mubr.f32.gmra.mrb[0].mxu0 %v719
    %v846 = vpop.f32.mrb[0].mxu0
    %v847 = vadd.f32 0.0, %v846
    %v848 = vpop.f32.mrb[0].mxu0
    %849 = vmatprep.mubr.f32.mxu0 0.0
    %850 = vmatmul.mubr.f32.gmra.mrb[0].mxu0 %v722
    %v851 = vpop.f32.mrb[0].mxu0
    %v852 = vadd.f32 0.0, %v851
    %v853 = vpop.f32.mrb[0].mxu0
    %854 = vmatprep.mubr.f32.mxu0 0.0
    %855 = vmatmul.mubr.f32.gmra.mrb[0].mxu0 %v725
    %v856 = vpop.f32.mrb[0].mxu0
    %v857 = vadd.f32 0.0, %v856
    %v858 = vpop.f32.mrb[0].mxu0
    %859 = vmatprep.mubr.f32.mxu0 0.0
    %860 = vmatmul.mubr.f32.gmra.mrb[0].mxu0 %v728
    %v861 = vpop.f32.mrb[0].mxu0
    %v862 = vadd.f32 0.0, %v861
    %v863 = vpop.f32.mrb[0].mxu0
    %864 = vmatprep.mubr.f32.mxu0 0.0
    %865 = vmatmul.mubr.f32.gmra.mrb[0].mxu0 %v731
    %v866 = vpop.f32.mrb[0].mxu0
    %v867 = vadd.f32 0.0, %v866
    %v868 = vpop.f32.mrb[0].mxu0
    %869 = vmatprep.mubr.f32.mxu0 0.0
    %870 = vmatmul.mubr.f32.gmra.mrb[0].mxu0 %v734
    %v871 = vpop.f32.mrb[0].mxu0
    %v872 = vadd.f32 0.0, %v871
    %v873 = vpop.f32.mrb[0].mxu0
    %874 = vmatprep.mubr.f32.mxu0 0.0
    %875 = vmatmul.mubr.f32.gmra.mrb[0].mxu0 %v737
    %v876 = vpop.f32.mrb[0].mxu0
    %v877 = vadd.f32 0.0, %v876
    %v878 = vpop.f32.mrb[0].mxu0
    %879 = vmatprep.mubr.f32.mxu0 0.0
    %880 = vmatmul.mubr.f32.gmra.mrb[0].mxu0 %v740
    %v881 = vpop.f32.mrb[0].mxu0
    %v882 = vadd.f32 0.0, %v881
    %v883 = vpop.f32.mrb[0].mxu0
    %884 = vmatprep.mubr.f32.mxu0 0.0
    %885 = vmatmul.mubr.f32.gmra.mrb[0].mxu0 %v743
    %v886 = vpop.f32.mrb[0].mxu0
    %v887 = vadd.f32 0.0, %v886
    %v888 = vpop.f32.mrb[0].mxu0
    %889 = vdwg.mxu0
    %v890 = vxor.u32 %v812, 2147483648
    %v891 = vxor.u32 %v817, 2147483648
    %v892 = vxor.u32 %v822, 2147483648
    %v893 = vxor.u32 %v827, 2147483648
    %v894 = vxor.u32 %v832, 2147483648
    %v895 = vxor.u32 %v837, 2147483648
    %v896 = vxor.u32 %v842, 2147483648
    %v897 = vxor.u32 %v847, 2147483648
    %v898 = vxor.u32 %v852, 2147483648
    %v899 = vxor.u32 %v857, 2147483648
    %v900 = vxor.u32 %v862, 2147483648
    %v901 = vxor.u32 %v867, 2147483648
    %v902 = vxor.u32 %v872, 2147483648
    %v903 = vxor.u32 %v877, 2147483648
    %v904 = vxor.u32 %v882, 2147483648
    %v905 = vxor.u32 %v887, 2147483648
    %v906 = vmul.f32 %v890, 1.442695
    %v907 = vpow.pop %v906
    %v908 = vmul.f32 %v891, 1.442695
    %v909 = vpow.pop %v908
    %v910 = vmul.f32 %v892, 1.442695
    %v911 = vpow.pop %v910
    %v912 = vmul.f32 %v893, 1.442695
    %v913 = vpow.pop %v912
    %v914 = vmul.f32 %v894, 1.442695
    %v915 = vpow.pop %v914
    %v916 = vmul.f32 %v895, 1.442695
    %v917 = vpow.pop %v916
    %v918 = vmul.f32 %v896, 1.442695
    %v919 = vpow.pop %v918
    %v920 = vmul.f32 %v897, 1.442695
    %v921 = vpow.pop %v920
    %v922 = vmul.f32 %v898, 1.442695
    %v923 = vpow.pop %v922
    %v924 = vmul.f32 %v899, 1.442695
    %v925 = vpow.pop %v924
    %v926 = vmul.f32 %v900, 1.442695
    %v927 = vpow.pop %v926
    %v928 = vmul.f32 %v901, 1.442695
    %v929 = vpow.pop %v928
    %v930 = vmul.f32 %v902, 1.442695
    %v931 = vpow.pop %v930
    %v932 = vmul.f32 %v903, 1.442695
    %v933 = vpow.pop %v932
    %v934 = vmul.f32 %v904, 1.442695
    %v935 = vpow.pop %v934
    %v936 = vmul.f32 %v905, 1.442695
    %v937 = vpow.pop %v936
    %v938 = vadd.f32 %v907, 1.0
    %v939 = vadd.f32 %v909, 1.0
    %v940 = vadd.f32 %v911, 1.0
    %v941 = vadd.f32 %v913, 1.0
    %v942 = vadd.f32 %v915, 1.0
    %v943 = vadd.f32 %v917, 1.0
    %v944 = vadd.f32 %v919, 1.0
    %v945 = vadd.f32 %v921, 1.0
    %v946 = vadd.f32 %v923, 1.0
    %v947 = vadd.f32 %v925, 1.0
    %v948 = vadd.f32 %v927, 1.0
    %v949 = vadd.f32 %v929, 1.0
    %v950 = vadd.f32 %v931, 1.0
    %v951 = vadd.f32 %v933, 1.0
    %v952 = vadd.f32 %v935, 1.0
    %v953 = vadd.f32 %v937, 1.0
    %v954 = vrcp.pop %v938
    %v955 = vmul.f32 1.0, %v954
    %v956 = vrcp.pop %v939
    %v957 = vmul.f32 1.0, %v956
    %v958 = vrcp.pop %v940
    %v959 = vmul.f32 1.0, %v958
    %v960 = vrcp.pop %v941
    %v961 = vmul.f32 1.0, %v960
    %v962 = vrcp.pop %v942
    %v963 = vmul.f32 1.0, %v962
    %v964 = vrcp.pop %v943
    %v965 = vmul.f32 1.0, %v964
    %v966 = vrcp.pop %v944
    %v967 = vmul.f32 1.0, %v966
    %v968 = vrcp.pop %v945
    %v969 = vmul.f32 1.0, %v968
    %v970 = vrcp.pop %v946
    %v971 = vmul.f32 1.0, %v970
    %v972 = vrcp.pop %v947
    %v973 = vmul.f32 1.0, %v972
    %v974 = vrcp.pop %v948
    %v975 = vmul.f32 1.0, %v974
    %v976 = vrcp.pop %v949
    %v977 = vmul.f32 1.0, %v976
    %v978 = vrcp.pop %v950
    %v979 = vmul.f32 1.0, %v978
    %v980 = vrcp.pop %v951
    %v981 = vmul.f32 1.0, %v980
    %v982 = vrcp.pop %v952
    %v983 = vmul.f32 1.0, %v982
    %v984 = vrcp.pop %v953
    %v985 = vmul.f32 1.0, %v984
    %v986 = vmul.f32 %v609, %v955
    %v987 = vmul.f32 %v610, %v957
    %v988 = vmul.f32 %v611, %v959
    %v989 = vmul.f32 %v612, %v961
    %v990 = vmul.f32 %v613, %v963
    %v991 = vmul.f32 %v614, %v965
    %v992 = vmul.f32 %v615, %v967
    %v993 = vmul.f32 %v616, %v969
    %v994 = vmul.f32 %v617, %v971
    %v995 = vmul.f32 %v618, %v973
    %v996 = vmul.f32 %v619, %v975
    %v997 = vmul.f32 %v620, %v977
    %v998 = vmul.f32 %v621, %v979
    %v999 = vmul.f32 %v622, %v981
    %v1000 = vmul.f32 %v623, %v983
    %v1001 = vmul.f32 %v624, %v985
    %vm1002 = vcmask 15360
    %v1003 = vsel %vm1002, %v986, 0.0
    %v1004 = vsel %vm1002, %v987, 0.0
    %v1005 = vadd.f32 %v1003, %v1004
    %v1006 = vsel %vm1002, %v988, 0.0
    %v1007 = vadd.f32 %v1005, %v1006
    %v1008 = vsel %vm1002, %v989, 0.0
    %v1009 = vadd.f32 %v1007, %v1008
    %v1010 = vsel %vm1002, %v990, 0.0
    %v1011 = vadd.f32 %v1009, %v1010
    %v1012 = vsel %vm1002, %v991, 0.0
    %v1013 = vadd.f32 %v1011, %v1012
    %v1014 = vsel %vm1002, %v992, 0.0
    %v1015 = vadd.f32 %v1013, %v1014
    %v1016 = vsel %vm1002, %v993, 0.0
    %v1017 = vadd.f32 %v1015, %v1016
    %v1018 = vsel %vm1002, %v994, 0.0
    %v1019 = vadd.f32 %v1017, %v1018
    %v1020 = vsel %vm1002, %v995, 0.0
    %v1021 = vadd.f32 %v1019, %v1020
    %v1022 = vsel %vm1002, %v996, 0.0
    %v1023 = vadd.f32 %v1021, %v1022
    %v1024 = vsel %vm1002, %v997, 0.0
    %v1025 = vadd.f32 %v1023, %v1024
    %v1026 = vsel %vm1002, %v998, 0.0
    %v1027 = vadd.f32 %v1025, %v1026
    %v1028 = vsel %vm1002, %v999, 0.0
    %v1029 = vadd.f32 %v1027, %v1028
    %v1030 = vsel %vm1002, %v1000, 0.0
    %v1031 = vadd.f32 %v1029, %v1030
    %v1032 = vsel %vm1002, %v1001, 0.0
    %v1033 = vadd.f32 %v1031, %v1032
    %v1034 = vrot.slane %v1033, 4
    %v1035 = vadd.f32 %v1033, %v1034
    %v1036 = vrot.slane %v1035, 2
    %v1037 = vadd.f32 %v1035, %v1036
    %v1038 = vrot.slane %v1037, 1
    %v1039 = vadd.f32 %v1037, %v1038
    %v1040 = vmul.f32 %v1039, 0.0078125
    %v1041 = vstv %s108
    %v1042 = vmul.f32 %v1040, %v1041
    %v1043 = vxor.u32 %v1042, 2147483648
    %v1044 = vmul.f32 %v1043, 1.442695
    %v1045 = vpow.pop %v1044
    %v1046 = vadd.f32 %v1045, 1.0
    %v1047 = vrcp.pop %v1046
    %v1048 = vmul.f32 1.0, %v1047
    %v1049 = vmul.f32 %v955, %v1048
    %v1050 = vmul.f32 %v957, %v1048
    %v1051 = vmul.f32 %v959, %v1048
    %v1052 = vmul.f32 %v961, %v1048
    %v1053 = vmul.f32 %v963, %v1048
    %v1054 = vmul.f32 %v965, %v1048
    %v1055 = vmul.f32 %v967, %v1048
    %v1056 = vmul.f32 %v969, %v1048
    %v1057 = vmul.f32 %v971, %v1048
    %v1058 = vmul.f32 %v973, %v1048
    %v1059 = vmul.f32 %v975, %v1048
    %v1060 = vmul.f32 %v977, %v1048
    %v1061 = vmul.f32 %v979, %v1048
    %v1062 = vmul.f32 %v981, %v1048
    %v1063 = vmul.f32 %v983, %v1048
    %v1064 = vmul.f32 %v985, %v1048
    %1065 = vxpose.xlu0.b32.start [1/16] %v1049, 128
    %1066 = vxpose.xlu0.b32.cont [2/16] %v1050, 128
    %1067 = vxpose.xlu0.b32.cont [3/16] %v1051, 128
    %1068 = vxpose.xlu0.b32.cont [4/16] %v1052, 128
    %1069 = vxpose.xlu0.b32.cont [5/16] %v1053, 128
    %1070 = vxpose.xlu0.b32.cont [6/16] %v1054, 128
    %1071 = vxpose.xlu0.b32.cont [7/16] %v1055, 128
    %1072 = vxpose.xlu0.b32.cont [8/16] %v1056, 128
    %1073 = vxpose.xlu0.b32.cont [9/16] %v1057, 128
    %1074 = vxpose.xlu0.b32.cont [10/16] %v1058, 128
    %1075 = vxpose.xlu0.b32.cont [11/16] %v1059, 128
    %1076 = vxpose.xlu0.b32.cont [12/16] %v1060, 128
    %1077 = vxpose.xlu0.b32.cont [13/16] %v1061, 128
    %1078 = vxpose.xlu0.b32.cont [14/16] %v1062, 128
    %1079 = vxpose.xlu0.b32.cont [15/16] %v1063, 128
    %1080 = vxpose.xlu0.b32.end [16/16] %v1064, 128
    %v1081 = vpop.trf.xlu0
    %v1082 = vpop.trf.xlu0
    %v1083 = vpop.trf.xlu0
    %v1084 = vpop.trf.xlu0
    %v1085 = vpop.trf.xlu0
    %v1086 = vpop.trf.xlu0
    %v1087 = vpop.trf.xlu0
    %v1088 = vpop.trf.xlu0
    %v1089 = vpop.trf.xlu0
    %v1090 = vpop.trf.xlu0
    %v1091 = vpop.trf.xlu0
    %v1092 = vpop.trf.xlu0
    %v1093 = vpop.trf.xlu0
    %v1094 = vpop.trf.xlu0
    %v1095 = vpop.trf.xlu0
    %v1096 = vpop.trf.xlu0
    %v1097 = vlaneseq
    %v1098 = vshrl.u32 %v1097, 7
    %v1099 = vsub.s32 0, %v1098
    %v1100 = vrot.slane %v1081, %v1099
    %1102 = vbcast.lane.b32.xlu0 %v1100, 256
    %v1103 = vpop.permute.xlu0 %1102
    %s1105 = sor.u32 256, 8
    %1106 = vbcast.lane.b32.xlu0 %v1100, %s1105
    %v1107 = vpop.permute.xlu0 %1106
    %s1109 = sor.u32 256, 16
    %1110 = vbcast.lane.b32.xlu0 %v1100, %s1109
    %v1111 = vpop.permute.xlu0 %1110
    %s1113 = sor.u32 256, 24
    %1114 = vbcast.lane.b32.xlu0 %v1100, %s1113
    %v1115 = vpop.permute.xlu0 %1114
    %s1117 = sor.u32 256, 32
    %1118 = vbcast.lane.b32.xlu0 %v1100, %s1117
    %v1119 = vpop.permute.xlu0 %1118
    %s1121 = sor.u32 256, 40
    %1122 = vbcast.lane.b32.xlu0 %v1100, %s1121
    %v1123 = vpop.permute.xlu0 %1122
    %s1125 = sor.u32 256, 48
    %1126 = vbcast.lane.b32.xlu0 %v1100, %s1125
    %v1127 = vpop.permute.xlu0 %1126
    %s1129 = sor.u32 256, 56
    %1130 = vbcast.lane.b32.xlu0 %v1100, %s1129
    %v1131 = vpop.permute.xlu0 %1130
    %s1133 = sor.u32 256, 64
    %1134 = vbcast.lane.b32.xlu0 %v1100, %s1133
    %v1135 = vpop.permute.xlu0 %1134
    %s1137 = sor.u32 256, 72
    %1138 = vbcast.lane.b32.xlu0 %v1100, %s1137
    %v1139 = vpop.permute.xlu0 %1138
    %s1141 = sor.u32 256, 80
    %1142 = vbcast.lane.b32.xlu0 %v1100, %s1141
    %v1143 = vpop.permute.xlu0 %1142
    %s1145 = sor.u32 256, 88
    %1146 = vbcast.lane.b32.xlu0 %v1100, %s1145
    %v1147 = vpop.permute.xlu0 %1146
    %s1149 = sor.u32 256, 96
    %1150 = vbcast.lane.b32.xlu0 %v1100, %s1149
    %v1151 = vpop.permute.xlu0 %1150
    %s1153 = sor.u32 256, 104
    %1154 = vbcast.lane.b32.xlu0 %v1100, %s1153
    %v1155 = vpop.permute.xlu0 %1154
    %s1157 = sor.u32 256, 112
    %1158 = vbcast.lane.b32.xlu0 %v1100, %s1157
    %v1159 = vpop.permute.xlu0 %1158
    %s1161 = sor.u32 256, 120
    %1162 = vbcast.lane.b32.xlu0 %v1100, %s1161
    %v1163 = vpop.permute.xlu0 %1162
    %v1164 = vlaneseq
    %v1165 = vshrl.u32 %v1164, 7
    %v1166 = vsub.s32 1, %v1165
    %v1167 = vrot.slane %v1081, %v1166
    %1169 = vbcast.lane.b32.xlu0 %v1167, 256
    %v1170 = vpop.permute.xlu0 %1169
    %s1172 = sor.u32 256, 8
    %1173 = vbcast.lane.b32.xlu0 %v1167, %s1172
    %v1174 = vpop.permute.xlu0 %1173
    %s1176 = sor.u32 256, 16
    %1177 = vbcast.lane.b32.xlu0 %v1167, %s1176
    %v1178 = vpop.permute.xlu0 %1177
    %s1180 = sor.u32 256, 24
    %1181 = vbcast.lane.b32.xlu0 %v1167, %s1180
    %v1182 = vpop.permute.xlu0 %1181
    %s1184 = sor.u32 256, 32
    %1185 = vbcast.lane.b32.xlu0 %v1167, %s1184
    %v1186 = vpop.permute.xlu0 %1185
    %s1188 = sor.u32 256, 40
    %1189 = vbcast.lane.b32.xlu0 %v1167, %s1188
    %v1190 = vpop.permute.xlu0 %1189
    %s1192 = sor.u32 256, 48
    %1193 = vbcast.lane.b32.xlu0 %v1167, %s1192
    %v1194 = vpop.permute.xlu0 %1193
    %s1196 = sor.u32 256, 56
    %1197 = vbcast.lane.b32.xlu0 %v1167, %s1196
    %v1198 = vpop.permute.xlu0 %1197
    %s1200 = sor.u32 256, 64
    %1201 = vbcast.lane.b32.xlu0 %v1167, %s1200
    %v1202 = vpop.permute.xlu0 %1201
    %s1204 = sor.u32 256, 72
    %1205 = vbcast.lane.b32.xlu0 %v1167, %s1204
    %v1206 = vpop.permute.xlu0 %1205
    %s1208 = sor.u32 256, 80
    %1209 = vbcast.lane.b32.xlu0 %v1167, %s1208
    %v1210 = vpop.permute.xlu0 %1209
    %s1212 = sor.u32 256, 88
    %1213 = vbcast.lane.b32.xlu0 %v1167, %s1212
    %v1214 = vpop.permute.xlu0 %1213
    %s1216 = sor.u32 256, 96
    %1217 = vbcast.lane.b32.xlu0 %v1167, %s1216
    %v1218 = vpop.permute.xlu0 %1217
    %s1220 = sor.u32 256, 104
    %1221 = vbcast.lane.b32.xlu0 %v1167, %s1220
    %v1222 = vpop.permute.xlu0 %1221
    %s1224 = sor.u32 256, 112
    %1225 = vbcast.lane.b32.xlu0 %v1167, %s1224
    %v1226 = vpop.permute.xlu0 %1225
    %s1228 = sor.u32 256, 120
    %1229 = vbcast.lane.b32.xlu0 %v1167, %s1228
    %v1230 = vpop.permute.xlu0 %1229
    %v1231 = vmul.f32 %v109, %v1103
    %v1232 = vmul.f32 %v110, %v1103
    %v1233 = vmul.f32 %v111, %v1107
    %v1234 = vmul.f32 %v112, %v1107
    %v1235 = vmul.f32 %v113, %v1111
    %v1236 = vmul.f32 %v114, %v1111
    %v1237 = vmul.f32 %v115, %v1115
    %v1238 = vmul.f32 %v116, %v1115
    %v1239 = vmul.f32 %v117, %v1119
    %v1240 = vmul.f32 %v118, %v1119
    %v1241 = vmul.f32 %v119, %v1123
    %v1242 = vmul.f32 %v120, %v1123
    %v1243 = vmul.f32 %v121, %v1127
    %v1244 = vmul.f32 %v122, %v1127
    %v1245 = vmul.f32 %v123, %v1131
    %v1246 = vmul.f32 %v124, %v1131
    %v1247 = vmul.f32 %v125, %v1170
    %v1248 = vmul.f32 %v126, %v1170
    %v1249 = vmul.f32 %v127, %v1174
    %v1250 = vmul.f32 %v128, %v1174
    %v1251 = vmul.f32 %v129, %v1178
    %v1252 = vmul.f32 %v130, %v1178
    %v1253 = vmul.f32 %v131, %v1182
    %v1254 = vmul.f32 %v132, %v1182
    %v1255 = vmul.f32 %v133, %v1186
    %v1256 = vmul.f32 %v134, %v1186
    %v1257 = vmul.f32 %v135, %v1190
    %v1258 = vmul.f32 %v136, %v1190
    %v1259 = vmul.f32 %v137, %v1194
    %v1260 = vmul.f32 %v138, %v1194
    %v1261 = vmul.f32 %v139, %v1198
    %v1262 = vmul.f32 %v140, %v1198
    %1263 = vst [vmem:[#allocation12] sm:$0xff] %v1231
    %1264 = vst [vmem:[#allocation12 + $0x8] sm:$0xff] %v1232
    %1265 = vst [vmem:[#allocation12 + $0x10] sm:$0xff] %v1233
    %1266 = vst [vmem:[#allocation12 + $0x18] sm:$0xff] %v1234
    %1267 = vst [vmem:[#allocation12 + $0x20] sm:$0xff] %v1235
    %1268 = vst [vmem:[#allocation12 + $0x28] sm:$0xff] %v1236
    %1269 = vst [vmem:[#allocation12 + $0x30] sm:$0xff] %v1237
    %1270 = vst [vmem:[#allocation12 + $0x38] sm:$0xff] %v1238
    %1271 = vst [vmem:[#allocation12 + $0x40] sm:$0xff] %v1239
    %1272 = vst [vmem:[#allocation12 + $0x48] sm:$0xff] %v1240
    %1273 = vst [vmem:[#allocation12 + $0x50] sm:$0xff] %v1241
    %1274 = vst [vmem:[#allocation12 + $0x58] sm:$0xff] %v1242
    %1275 = vst [vmem:[#allocation12 + $0x60] sm:$0xff] %v1243
    %1276 = vst [vmem:[#allocation12 + $0x68] sm:$0xff] %v1244
    %1277 = vst [vmem:[#allocation12 + $0x70] sm:$0xff] %v1245
    %1278 = vst [vmem:[#allocation12 + $0x78] sm:$0xff] %v1246
    %1279 = vst [vmem:[#allocation12 + $0x100] sm:$0xff] %v1247
    %1280 = vst [vmem:[#allocation12 + $0x108] sm:$0xff] %v1248
    %1281 = vst [vmem:[#allocation12 + $0x110] sm:$0xff] %v1249
    %1282 = vst [vmem:[#allocation12 + $0x118] sm:$0xff] %v1250
    %1283 = vst [vmem:[#allocation12 + $0x120] sm:$0xff] %v1251
    %1284 = vst [vmem:[#allocation12 + $0x128] sm:$0xff] %v1252
    %1285 = vst [vmem:[#allocation12 + $0x130] sm:$0xff] %v1253
    %1286 = vst [vmem:[#allocation12 + $0x138] sm:$0xff] %v1254
    %1287 = vst [vmem:[#allocation12 + $0x140] sm:$0xff] %v1255
    %1288 = vst [vmem:[#allocation12 + $0x148] sm:$0xff] %v1256
    %1289 = vst [vmem:[#allocation12 + $0x150] sm:$0xff] %v1257
    %1290 = vst [vmem:[#allocation12 + $0x158] sm:$0xff] %v1258
    %1291 = vst [vmem:[#allocation12 + $0x160] sm:$0xff] %v1259
    %1292 = vst [vmem:[#allocation12 + $0x168] sm:$0xff] %v1260
    %1293 = vst [vmem:[#allocation12 + $0x170] sm:$0xff] %v1261
    %1294 = vst [vmem:[#allocation12 + $0x178] sm:$0xff] %v1262
    %v1295 = vld [vmem:[#allocation6] sm:$0xff]
    %v1296 = vld [vmem:[#allocation6 + $0x8] sm:$0xff]
    %v1297 = vld [vmem:[#allocation6 + $0x10] sm:$0xff]
    %v1298 = vld [vmem:[#allocation6 + $0x18] sm:$0xff]
    %v1299 = vld [vmem:[#allocation6 + $0x20] sm:$0xff]
    %v1300 = vld [vmem:[#allocation6 + $0x28] sm:$0xff]
    %v1301 = vld [vmem:[#allocation6 + $0x30] sm:$0xff]
    %v1302 = vld [vmem:[#allocation6 + $0x38] sm:$0xff]
    %v1303 = vld [vmem:[#allocation6 + $0x40] sm:$0xff]
    %v1304 = vld [vmem:[#allocation6 + $0x48] sm:$0xff]
    %v1305 = vld [vmem:[#allocation6 + $0x50] sm:$0xff]
    %v1306 = vld [vmem:[#allocation6 + $0x58] sm:$0xff]
    %v1307 = vld [vmem:[#allocation6 + $0x60] sm:$0xff]
    %v1308 = vld [vmem:[#allocation6 + $0x68] sm:$0xff]
    %v1309 = vld [vmem:[#allocation6 + $0x70] sm:$0xff]
    %v1310 = vld [vmem:[#allocation6 + $0x78] sm:$0xff]
    %v1311 = vmul.f32 %v1295, %v1135
    %v1312 = vmul.f32 %v1296, %v1135
    %v1313 = vmul.f32 %v1297, %v1139
    %v1314 = vmul.f32 %v1298, %v1139
    %v1315 = vmul.f32 %v1299, %v1143
    %v1316 = vmul.f32 %v1300, %v1143
    %v1317 = vmul.f32 %v1301, %v1147
    %v1318 = vmul.f32 %v1302, %v1147
    %v1319 = vmul.f32 %v1303, %v1202
    %v1320 = vmul.f32 %v1304, %v1202
    %v1321 = vmul.f32 %v1305, %v1206
    %v1322 = vmul.f32 %v1306, %v1206
    %v1323 = vmul.f32 %v1307, %v1210
    %v1324 = vmul.f32 %v1308, %v1210
    %v1325 = vmul.f32 %v1309, %v1214
    %v1326 = vmul.f32 %v1310, %v1214
    %1327 = vst [vmem:[#allocation12 + $0x80] sm:$0xff] %v1311
    %1328 = vst [vmem:[#allocation12 + $0x88] sm:$0xff] %v1312
    %1329 = vst [vmem:[#allocation12 + $0x90] sm:$0xff] %v1313
    %1330 = vst [vmem:[#allocation12 + $0x98] sm:$0xff] %v1314
    %1331 = vst [vmem:[#allocation12 + $0xa0] sm:$0xff] %v1315
    %1332 = vst [vmem:[#allocation12 + $0xa8] sm:$0xff] %v1316
    %1333 = vst [vmem:[#allocation12 + $0xb0] sm:$0xff] %v1317
    %1334 = vst [vmem:[#allocation12 + $0xb8] sm:$0xff] %v1318
    %1335 = vst [vmem:[#allocation12 + $0x180] sm:$0xff] %v1319
    %1336 = vst [vmem:[#allocation12 + $0x188] sm:$0xff] %v1320
    %1337 = vst [vmem:[#allocation12 + $0x190] sm:$0xff] %v1321
    %1338 = vst [vmem:[#allocation12 + $0x198] sm:$0xff] %v1322
    %1339 = vst [vmem:[#allocation12 + $0x1a0] sm:$0xff] %v1323
    %1340 = vst [vmem:[#allocation12 + $0x1a8] sm:$0xff] %v1324
    %1341 = vst [vmem:[#allocation12 + $0x1b0] sm:$0xff] %v1325
    %1342 = vst [vmem:[#allocation12 + $0x1b8] sm:$0xff] %v1326
    %v1343 = vld [vmem:[#allocation8] sm:$0xff]
    %v1344 = vld [vmem:[#allocation8 + $0x8] sm:$0xff]
    %v1345 = vld [vmem:[#allocation8 + $0x10] sm:$0xff]
    %v1346 = vld [vmem:[#allocation8 + $0x18] sm:$0xff]
    %v1347 = vld [vmem:[#allocation8 + $0x20] sm:$0xff]
    %v1348 = vld [vmem:[#allocation8 + $0x28] sm:$0xff]
    %v1349 = vld [vmem:[#allocation8 + $0x30] sm:$0xff]
    %v1350 = vld [vmem:[#allocation8 + $0x38] sm:$0xff]
    %v1351 = vld [vmem:[#allocation8 + $0x40] sm:$0xff]
    %v1352 = vld [vmem:[#allocation8 + $0x48] sm:$0xff]
    %v1353 = vld [vmem:[#allocation8 + $0x50] sm:$0xff]
    %v1354 = vld [vmem:[#allocation8 + $0x58] sm:$0xff]
    %v1355 = vld [vmem:[#allocation8 + $0x60] sm:$0xff]
    %v1356 = vld [vmem:[#allocation8 + $0x68] sm:$0xff]
    %v1357 = vld [vmem:[#allocation8 + $0x70] sm:$0xff]
    %v1358 = vld [vmem:[#allocation8 + $0x78] sm:$0xff]
    %v1359 = vmul.f32 %v1343, %v1151
    %v1360 = vmul.f32 %v1344, %v1151
    %v1361 = vmul.f32 %v1345, %v1155
    %v1362 = vmul.f32 %v1346, %v1155
    %v1363 = vmul.f32 %v1347, %v1159
    %v1364 = vmul.f32 %v1348, %v1159
    %v1365 = vmul.f32 %v1349, %v1163
    %v1366 = vmul.f32 %v1350, %v1163
    %v1367 = vmul.f32 %v1351, %v1218
    %v1368 = vmul.f32 %v1352, %v1218
    %v1369 = vmul.f32 %v1353, %v1222
    %v1370 = vmul.f32 %v1354, %v1222
    %v1371 = vmul.f32 %v1355, %v1226
    %v1372 = vmul.f32 %v1356, %v1226
    %v1373 = vmul.f32 %v1357, %v1230
    %v1374 = vmul.f32 %v1358, %v1230
    %1375 = vst [vmem:[#allocation12 + $0xc0] sm:$0xff] %v1359
    %1376 = vst [vmem:[#allocation12 + $0xc8] sm:$0xff] %v1360
    %1377 = vst [vmem:[#allocation12 + $0xd0] sm:$0xff] %v1361
    %1378 = vst [vmem:[#allocation12 + $0xd8] sm:$0xff] %v1362
    %1379 = vst [vmem:[#allocation12 + $0xe0] sm:$0xff] %v1363
    %1380 = vst [vmem:[#allocation12 + $0xe8] sm:$0xff] %v1364
    %1381 = vst [vmem:[#allocation12 + $0xf0] sm:$0xff] %v1365
    %1382 = vst [vmem:[#allocation12 + $0xf8] sm:$0xff] %v1366
    %1383 = vst [vmem:[#allocation12 + $0x1c0] sm:$0xff] %v1367
    %1384 = vst [vmem:[#allocation12 + $0x1c8] sm:$0xff] %v1368
    %1385 = vst [vmem:[#allocation12 + $0x1d0] sm:$0xff] %v1369
    %1386 = vst [vmem:[#allocation12 + $0x1d8] sm:$0xff] %v1370
    %1387 = vst [vmem:[#allocation12 + $0x1e0] sm:$0xff] %v1371
    %1388 = vst [vmem:[#allocation12 + $0x1e8] sm:$0xff] %v1372
    %1389 = vst [vmem:[#allocation12 + $0x1f0] sm:$0xff] %v1373
    %1390 = vst [vmem:[#allocation12 + $0x1f8] sm:$0xff] %v1374
    // Predicated region
    $region46: #{tpu_custom_call.1} parent=1 // pred_check
      _
    $region47: #{tpu_custom_call.1} parent=1 // pred_check_branch
      %1392 = sbr.rel (0) target = $region49
    $region48: #{tpu_custom_call.1} parent=1 // pred_region
      %s1394 = ssub.s32 8192, 8192
      %1395 = vsyncadd [#allocation5], %s1394
      %s1396 = sshll.u32 [#allocation12], 4
      %s1397 = int_to_ptr.vmem [resolvable:$true] %s1396
      %1402 = dma.vmem_to_hbm [thread:$0]  %s1397, 8192, %s6, [#allocation5], 256, 256, 16
    $region49: #{tpu_custom_call.1} parent=1 // pred_fallthru
      _
    // Predicated region
    $region50: #{tpu_custom_call.1} parent=1 // pred_check
      _
    $region51: #{tpu_custom_call.1} parent=1 // pred_check_branch
      %1404 = sbr.rel (0) target = $region53
    $region52: #{tpu_custom_call.1} parent=1 // pred_region
      %1405 = dma.done [#allocation5], 8192
    $region53: #{tpu_custom_call.1} parent=1 // pred_fallthru
      _
    %1406 = vsyncpa [#allocation4], 1
    %1407 = vsyncpa [#allocation7], 1
    %1408 = vsyncpa [#allocation10], 1
    %1409 = vsyncpa [#allocation5], 1

</llo_original>
